<compile_context>
chip_gen: v5e
topology: v5e:2x2
jax: 0.10.0
libtpu: 0.0.40
codegen_flags: <defaults>
</compile_context>

<pallas_src>
import jax
import jax.numpy as jnp
from jax.experimental import pallas as pl
from jax.experimental.pallas import tpu as pltpu


# ----------------------------- model hyper-params -----------------------------
D = 2          # params['d']     : input coordinate dimension (square domain)
WIDTH = 128    # params['width'] : hidden width (lane friendly)
DEPTH = 2      # params['depth'] : number of hidden Linear+tanh layers
DD = 1         # params['dd']    : output dimension (scalar potential)

SUB_N = 128        # in-kernel sub-block width (lanes) for MXU/EUP overlap
MAX_TILE_N = 1024  # cap on batch rows per grid step (keeps unroll + VMEM modest)


# --------------------------------- kernel -------------------------------------
def ritznet_kernel(x_ref, w_in_ref, b_in_ref, wh_ref, bh_ref, w_out_ref,
                   b_out_ref, o_ref, h_a, h_b):
    # x_ref:    (D, TILE_N)          batch on the lane axis (lane-dense)
    # w_in_ref: (WIDTH, D)           PyTorch-native (out, in)
    # b_in_ref: (WIDTH, 1)
    # wh_ref:   (depth, WIDTH, WIDTH), bh_ref: (depth, WIDTH, 1)
    # w_out_ref:(WIDTH, 1),          b_out_ref: (1, 1)
    # o_ref:    (DD=1, TILE_N)       lane-dense output slab
    # h_a, h_b: (WIDTH, TILE_N)      ping-pong activation scratch (h^T)
    depth = wh_ref.shape[0]
    d = x_ref.shape[0]
    tile_n = x_ref.shape[1]
    n_sub = tile_n // SUB_N
    h_dtype = h_a.dtype
    bufs = (h_a, h_b)

    # ---- input layer (K = d = 2): rank-1 VPU updates, keep the MXU free ------
    b_in = b_in_ref[...]                                   # (WIDTH, 1)
    w_cols = [w_in_ref[:, k:k + 1] for k in range(d)]      # d x (WIDTH, 1)
    for s in range(n_sub):
        cols = slice(s * SUB_N, (s + 1) * SUB_N)
        acc = w_cols[0] * x_ref[0:1, cols]                 # (WIDTH, SUB_N)
        for k in range(1, d):
            acc = acc + w_cols[k] * x_ref[k:k + 1, cols]
        bufs[0][:, cols] = jnp.tanh(acc + b_in).astype(h_dtype)

    # ---- hidden layers: h_new^T = tanh(W @ h^T + b) on the MXU ---------------
    # Sub-blocked so tanh (EUP) of block i overlaps the matmul of block i+1.
    src = 0
    for l in range(depth):
        w_l = wh_ref[l]                                    # (WIDTH, WIDTH), maybe bf16
        b_l = bh_ref[l]                                    # (WIDTH, 1), f32
        dst = 1 - src
        for s in range(n_sub):
            cols = slice(s * SUB_N, (s + 1) * SUB_N)
            z = jnp.dot(w_l, bufs[src][:, cols],
                        preferred_element_type=jnp.float32) + b_l
            bufs[dst][:, cols] = jnp.tanh(z).astype(h_dtype)
        src = dst

    # ---- output projection (WIDTH -> 1): VPU multiply + sublane reduction ----
    w_out = w_out_ref[...]                                 # (WIDTH, 1)
    b_out = b_out_ref[...]                                 # (1, 1)
    for s in range(n_sub):
        cols = slice(s * SUB_N, (s + 1) * SUB_N)
        prod = bufs[src][:, cols].astype(jnp.float32) * w_out
        o_ref[:, cols] = (jnp.sum(prod, axis=0, keepdims=True)
                          + b_out).astype(o_ref.dtype)


# -------------------------------- wrapper --------------------------------------
def _pick_tile_n(n):
    """Largest batch tile <= MAX_TILE_N that divides n, with >= 2 grid steps
    (so a v7x megacore can shard the batch across its two TensorCores)."""
    if n % (2 * SUB_N) != 0:
        raise ValueError(f"batch size {n} must be a multiple of {2 * SUB_N}")
    n_blocks = n // SUB_N
    steps = max(2, (n + MAX_TILE_N - 1) // MAX_TILE_N)
    while n_blocks % steps:
        steps += 1
    return (n_blocks // steps) * SUB_N


def ritznet_forward(x, params, *, hidden_dtype=jnp.float32):
    """x: (N, D) float32. params: PyTorch-layout weights (see init_params)."""
    n, d = x.shape
    if d != D:
        raise ValueError(f"expected d={D}, got {d}")
    if params["w_out"].shape != (WIDTH, 1):
        raise ValueError("output stage of this kernel assumes dd == 1")
    depth = params["wh"].shape[0]

    tile_n = _pick_tile_n(n)
    assert tile_n % SUB_N == 0 and n % tile_n == 0
    n_tiles = n // tile_n

    xt = x.T                                 # (D, n): batch on the lane axis
    wh = params["wh"].astype(hidden_dtype)   # bf16 halves weight DMA on v6e/v7x

    # Constant-index weight blocks are DMA'd once; default double-buffering of
    # these ~132 KiB constants is accepted (pl.Buffered(1) skipped on purpose).
    full = lambda shape: pl.BlockSpec(shape, lambda i: (0,) * len(shape))

    out_t = pl.pallas_call(
        ritznet_kernel,
        out_shape=jax.ShapeDtypeStruct((DD, n), jnp.float32),
        grid_spec=pltpu.PrefetchScalarGridSpec(
            num_scalar_prefetch=0,
            grid=(n_tiles,),
            in_specs=[
                pl.BlockSpec((D, tile_n), lambda i: (0, i)),   # x^T tile
                full((WIDTH, D)),                              # W_in  (out, in)
                full((WIDTH, 1)),                              # b_in  column
                full((depth, WIDTH, WIDTH)),                   # hidden W stack
                full((depth, WIDTH, 1)),                       # hidden b columns
                full((WIDTH, 1)),                              # w_out column
                full((1, 1)),                                  # b_out
            ],
            # Lane-dense (1, tile_n) output slab -> unmasked stores; transposed
            # back to (n, 1) outside the kernel (layout plumbing only).
            out_specs=pl.BlockSpec((DD, tile_n), lambda i: (0, i)),
            scratch_shapes=[pltpu.VMEM((WIDTH, tile_n), hidden_dtype),
                            pltpu.VMEM((WIDTH, tile_n), hidden_dtype)],
        ),
        compiler_params=pltpu.CompilerParams(
            dimension_semantics=("parallel",)),
    )(xt, params["w_in"], params["b_in"], wh, params["bh"],
      params["w_out"], params["b_out"])

    return out_t.T                            # (n, DD)


# ----------------------- deterministic parameter init --------------------------
def init_params(key):
    """PyTorch nn.Linear default init U(-1/sqrt(fan_in), 1/sqrt(fan_in)).
    Weights kept in PyTorch-native (out_features, in_features) layout;
    biases stored as columns; w_out stored as a (WIDTH, 1) column."""
    keys = jax.random.split(key, 6)

    def lin(kw, kb, fan_in, fan_out):
        bound = float(fan_in) ** -0.5
        w = jax.random.uniform(kw, (fan_out, fan_in), jnp.float32, -bound, bound)
        b = jax.random.uniform(kb, (fan_out, 1), jnp.float32, -bound, bound)
        return w, b

    w_in, b_in = lin(keys[0], keys[1], D, WIDTH)            # (WIDTH, D), (WIDTH, 1)

    kh = jax.random.split(keys[2], 2 * DEPTH)
    wh_list, bh_list = [], []
    for l in range(DEPTH):
        w, b = lin(kh[2 * l], kh[2 * l + 1], WIDTH, WIDTH)
        wh_list.append(w)
        bh_list.append(b)
    wh = jnp.stack(wh_list, axis=0)                         # (DEPTH, WIDTH, WIDTH)
    bh = jnp.stack(bh_list, axis=0)                         # (DEPTH, WIDTH, 1)

    w_out_po, b_out_po = lin(keys[3], keys[4], WIDTH, DD)   # (DD, WIDTH), (DD, 1)
    w_out = w_out_po.T                                      # (WIDTH, DD) column
    b_out = b_out_po.T                                      # (1, DD)

    return {"w_in": w_in, "b_in": b_in, "wh": wh, "bh": bh,
            "w_out": w_out, "b_out": b_out}


# ------------------------------ pure-JAX reference -----------------------------
def ritznet_ref(x, p, hidden_dtype=jnp.float32):
    """Matches the PyTorch forward; optional bf16 hidden-layer matmuls with f32 accum."""
    h = jnp.tanh(x @ p["w_in"].T + p["b_in"][:, 0]).astype(hidden_dtype)    # (N, WIDTH)
    for l in range(p["wh"].shape[0]):
        w = p["wh"][l].astype(hidden_dtype)
        z = jnp.dot(h, w.T, preferred_element_type=jnp.float32) + p["bh"][l][:, 0]
        h = jnp.tanh(z).astype(hidden_dtype)
    return h.astype(jnp.float32) @ p["w_out"] + p["b_out"]                  # (N, DD)


if __name__ == "__main__":
    key = jax.random.PRNGKey(0)
    k_x, k_p = jax.random.split(key)

    n = 1024                                   # collocation points in [0,1)^2
    x = jax.random.uniform(k_x, (n, D), jnp.float32)
    params = init_params(k_p)

    # float32 path (exact PyTorch semantics)
    out = jax.block_until_ready(ritznet_forward(x, params))
    ref = ritznet_ref(x, params)
    assert out.shape == (n, DD)
    assert jnp.allclose(out, ref, atol=1e-4, rtol=1e-4), \
        float(jnp.max(jnp.abs(out - ref)))

    # bf16 hidden-layer fast path (v6e/v7x MXU rate), looser tolerance
    out_bf16 = jax.block_until_ready(
        ritznet_forward(x, params, hidden_dtype=jnp.bfloat16))
    ref_bf16 = ritznet_ref(x, params, hidden_dtype=jnp.bfloat16)
    assert jnp.allclose(out_bf16, ref_bf16, atol=2e-2, rtol=2e-2), \
        float(jnp.max(jnp.abs(out_bf16 - ref_bf16)))

    print("KERNEL_OK")
</pallas_src>

<mosaic_0001>
module attributes {stable_mosaic.version = 11 : i64} {
  func.func @ritznet_kernel(%arg0: i32, %arg1: memref<2x512xf32, #tpu.memory_space<vmem>>, %arg2: memref<128x2xf32, #tpu.memory_space<vmem>>, %arg3: memref<128x1xf32, #tpu.memory_space<vmem>>, %arg4: memref<2x128x128xf32, #tpu.memory_space<vmem>>, %arg5: memref<2x128x1xf32, #tpu.memory_space<vmem>>, %arg6: memref<128x1xf32, #tpu.memory_space<vmem>>, %arg7: memref<1x1xf32, #tpu.memory_space<vmem>>, %arg8: memref<1x512xf32, #tpu.memory_space<vmem>>, %arg9: memref<128x512xf32, #tpu.memory_space<vmem>>, %arg10: memref<128x512xf32, #tpu.memory_space<vmem>>) attributes {dimension_semantics = [#tpu.dimension_semantics<parallel>], iteration_bounds = array<i64: 2>, scalar_prefetch = 0 : i64, scratch_operands = 2 : i64, tpu.core_type = #tpu.core_type<tc>, window_params = [{transform_indices = @transform_0, window_bounds = array<i64: 2, 512>}, {pipeline_mode = #tpu.pipeline_mode<synchronous>, transform_indices = @transform_1, window_bounds = array<i64: 128, 2>}, {pipeline_mode = #tpu.pipeline_mode<synchronous>, transform_indices = @transform_2, window_bounds = array<i64: 128, 1>}, {pipeline_mode = #tpu.pipeline_mode<synchronous>, transform_indices = @transform_3, window_bounds = array<i64: 2, 128, 128>}, {pipeline_mode = #tpu.pipeline_mode<synchronous>, transform_indices = @transform_4, window_bounds = array<i64: 2, 128, 1>}, {pipeline_mode = #tpu.pipeline_mode<synchronous>, transform_indices = @transform_5, window_bounds = array<i64: 128, 1>}, {pipeline_mode = #tpu.pipeline_mode<synchronous>, transform_indices = @transform_6, window_bounds = array<i64: 1, 1>}, {transform_indices = @transform_7, window_bounds = array<i64: 1, 512>}]} {
    %c0 = arith.constant 0 : index
    %c0_0 = arith.constant 0 : index
    %0 = vector.load %arg3[%c0, %c0_0] : memref<128x1xf32, #tpu.memory_space<vmem>>, vector<128x1xf32>
    %c0_1 = arith.constant 0 : index
    %c0_2 = arith.constant 0 : index
    %1 = vector.load %arg2[%c0_1, %c0_2] : memref<128x2xf32, #tpu.memory_space<vmem>>, vector<128x1xf32>
    %c0_3 = arith.constant 0 : index
    %c1 = arith.constant 1 : index
    %2 = vector.load %arg2[%c0_3, %c1] : memref<128x2xf32, #tpu.memory_space<vmem>>, vector<128x1xf32>
    %c0_4 = arith.constant 0 : index
    %c0_5 = arith.constant 0 : index
    %3 = vector.load %arg1[%c0_4, %c0_5] : memref<2x512xf32, #tpu.memory_space<vmem>>, vector<1x128xf32>
    %4 = vector.broadcast %1 : vector<128x1xf32> to vector<128x128xf32>
    %5 = vector.broadcast %3 : vector<1x128xf32> to vector<128x128xf32>
    %6 = arith.mulf %4, %5 : vector<128x128xf32>
    %c1_6 = arith.constant 1 : index
    %c0_7 = arith.constant 0 : index
    %7 = vector.load %arg1[%c1_6, %c0_7] : memref<2x512xf32, #tpu.memory_space<vmem>>, vector<1x128xf32>
    %8 = vector.broadcast %2 : vector<128x1xf32> to vector<128x128xf32>
    %9 = vector.broadcast %7 : vector<1x128xf32> to vector<128x128xf32>
    %10 = arith.mulf %8, %9 : vector<128x128xf32>
    %11 = arith.addf %6, %10 : vector<128x128xf32>
    %12 = vector.broadcast %0 : vector<128x1xf32> to vector<128x128xf32>
    %13 = arith.addf %11, %12 : vector<128x128xf32>
    %14 = math.tanh %13 : vector<128x128xf32>
    %c0_8 = arith.constant 0 : index
    %c0_9 = arith.constant 0 : index
    %15 = vector.load %arg9[%c0_8, %c0_9] : memref<128x512xf32, #tpu.memory_space<vmem>>, vector<128x128xf32>
    tpu.vector_store %arg9[%c0_8, %c0_9], %14 {strides = array<i32>} : memref<128x512xf32, #tpu.memory_space<vmem>>, vector<128x128xf32>,
    %c0_10 = arith.constant 0 : index
    %c128 = arith.constant 128 : index
    %16 = vector.load %arg1[%c0_10, %c128] : memref<2x512xf32, #tpu.memory_space<vmem>>, vector<1x128xf32>
    %17 = vector.broadcast %1 : vector<128x1xf32> to vector<128x128xf32>
    %18 = vector.broadcast %16 : vector<1x128xf32> to vector<128x128xf32>
    %19 = arith.mulf %17, %18 : vector<128x128xf32>
    %c1_11 = arith.constant 1 : index
    %c128_12 = arith.constant 128 : index
    %20 = vector.load %arg1[%c1_11, %c128_12] : memref<2x512xf32, #tpu.memory_space<vmem>>, vector<1x128xf32>
    %21 = vector.broadcast %2 : vector<128x1xf32> to vector<128x128xf32>
    %22 = vector.broadcast %20 : vector<1x128xf32> to vector<128x128xf32>
    %23 = arith.mulf %21, %22 : vector<128x128xf32>
    %24 = arith.addf %19, %23 : vector<128x128xf32>
    %25 = vector.broadcast %0 : vector<128x1xf32> to vector<128x128xf32>
    %26 = arith.addf %24, %25 : vector<128x128xf32>
    %27 = math.tanh %26 : vector<128x128xf32>
    %c0_13 = arith.constant 0 : index
    %c128_14 = arith.constant 128 : index
    %28 = vector.load %arg9[%c0_13, %c128_14] : memref<128x512xf32, #tpu.memory_space<vmem>>, vector<128x128xf32>
    tpu.vector_store %arg9[%c0_13, %c128_14], %27 {strides = array<i32>} : memref<128x512xf32, #tpu.memory_space<vmem>>, vector<128x128xf32>,
    %c0_15 = arith.constant 0 : index
    %c256 = arith.constant 256 : index
    %29 = vector.load %arg1[%c0_15, %c256] : memref<2x512xf32, #tpu.memory_space<vmem>>, vector<1x128xf32>
    %30 = vector.broadcast %1 : vector<128x1xf32> to vector<128x128xf32>
    %31 = vector.broadcast %29 : vector<1x128xf32> to vector<128x128xf32>
    %32 = arith.mulf %30, %31 : vector<128x128xf32>
    %c1_16 = arith.constant 1 : index
    %c256_17 = arith.constant 256 : index
    %33 = vector.load %arg1[%c1_16, %c256_17] : memref<2x512xf32, #tpu.memory_space<vmem>>, vector<1x128xf32>
    %34 = vector.broadcast %2 : vector<128x1xf32> to vector<128x128xf32>
    %35 = vector.broadcast %33 : vector<1x128xf32> to vector<128x128xf32>
    %36 = arith.mulf %34, %35 : vector<128x128xf32>
    %37 = arith.addf %32, %36 : vector<128x128xf32>
    %38 = vector.broadcast %0 : vector<128x1xf32> to vector<128x128xf32>
    %39 = arith.addf %37, %38 : vector<128x128xf32>
    %40 = math.tanh %39 : vector<128x128xf32>
    %c0_18 = arith.constant 0 : index
    %c256_19 = arith.constant 256 : index
    %41 = vector.load %arg9[%c0_18, %c256_19] : memref<128x512xf32, #tpu.memory_space<vmem>>, vector<128x128xf32>
    tpu.vector_store %arg9[%c0_18, %c256_19], %40 {strides = array<i32>} : memref<128x512xf32, #tpu.memory_space<vmem>>, vector<128x128xf32>,
    %c0_20 = arith.constant 0 : index
    %c384 = arith.constant 384 : index
    %42 = vector.load %arg1[%c0_20, %c384] : memref<2x512xf32, #tpu.memory_space<vmem>>, vector<1x128xf32>
    %43 = vector.broadcast %1 : vector<128x1xf32> to vector<128x128xf32>
    %44 = vector.broadcast %42 : vector<1x128xf32> to vector<128x128xf32>
    %45 = arith.mulf %43, %44 : vector<128x128xf32>
    %c1_21 = arith.constant 1 : index
    %c384_22 = arith.constant 384 : index
    %46 = vector.load %arg1[%c1_21, %c384_22] : memref<2x512xf32, #tpu.memory_space<vmem>>, vector<1x128xf32>
    %47 = vector.broadcast %2 : vector<128x1xf32> to vector<128x128xf32>
    %48 = vector.broadcast %46 : vector<1x128xf32> to vector<128x128xf32>
    %49 = arith.mulf %47, %48 : vector<128x128xf32>
    %50 = arith.addf %45, %49 : vector<128x128xf32>
    %51 = vector.broadcast %0 : vector<128x1xf32> to vector<128x128xf32>
    %52 = arith.addf %50, %51 : vector<128x128xf32>
    %53 = math.tanh %52 : vector<128x128xf32>
    %c0_23 = arith.constant 0 : index
    %c384_24 = arith.constant 384 : index
    %54 = vector.load %arg9[%c0_23, %c384_24] : memref<128x512xf32, #tpu.memory_space<vmem>>, vector<128x128xf32>
    tpu.vector_store %arg9[%c0_23, %c384_24], %53 {strides = array<i32>} : memref<128x512xf32, #tpu.memory_space<vmem>>, vector<128x128xf32>,
    %c0_25 = arith.constant 0 : index
    %c0_26 = arith.constant 0 : index
    %c0_27 = arith.constant 0 : index
    %55 = vector.load %arg4[%c0_25, %c0_26, %c0_27] : memref<2x128x128xf32, #tpu.memory_space<vmem>>, vector<1x128x128xf32>
    %56 = vector.shape_cast %55 : vector<1x128x128xf32> to vector<128x128xf32>
    %c0_28 = arith.constant 0 : index
    %c0_29 = arith.constant 0 : index
    %c0_30 = arith.constant 0 : index
    %57 = vector.load %arg5[%c0_28, %c0_29, %c0_30] : memref<2x128x1xf32, #tpu.memory_space<vmem>>, vector<1x128x1xf32>
    %58 = vector.shape_cast %57 : vector<1x128x1xf32> to vector<128x1xf32>
    %c0_31 = arith.constant 0 : index
    %c0_32 = arith.constant 0 : index
    %59 = vector.load %arg9[%c0_31, %c0_32] : memref<128x512xf32, #tpu.memory_space<vmem>>, vector<128x128xf32>
    %cst = arith.constant dense<0.000000e+00> : vector<128x128xf32>
    %60 = tpu.matmul %56, %59, %cst {dimension_numbers = #tpu.dot_dimension_numbers<[1], [0], [0], [1], [0, 0, 1, 1], [], []>} : vector<128x128xf32>, vector<128x128xf32>, vector<128x128xf32> -> vector<128x128xf32>
    %61 = vector.broadcast %58 : vector<128x1xf32> to vector<128x128xf32>
    %62 = arith.addf %60, %61 : vector<128x128xf32>
    %63 = math.tanh %62 : vector<128x128xf32>
    %c0_33 = arith.constant 0 : index
    %c0_34 = arith.constant 0 : index
    %64 = vector.load %arg10[%c0_33, %c0_34] : memref<128x512xf32, #tpu.memory_space<vmem>>, vector<128x128xf32>
    tpu.vector_store %arg10[%c0_33, %c0_34], %63 {strides = array<i32>} : memref<128x512xf32, #tpu.memory_space<vmem>>, vector<128x128xf32>,
    %c0_35 = arith.constant 0 : index
    %c128_36 = arith.constant 128 : index
    %65 = vector.load %arg9[%c0_35, %c128_36] : memref<128x512xf32, #tpu.memory_space<vmem>>, vector<128x128xf32>
    %cst_37 = arith.constant dense<0.000000e+00> : vector<128x128xf32>
    %66 = tpu.matmul %56, %65, %cst_37 {dimension_numbers = #tpu.dot_dimension_numbers<[1], [0], [0], [1], [0, 0, 1, 1], [], []>} : vector<128x128xf32>, vector<128x128xf32>, vector<128x128xf32> -> vector<128x128xf32>
    %67 = vector.broadcast %58 : vector<128x1xf32> to vector<128x128xf32>
    %68 = arith.addf %66, %67 : vector<128x128xf32>
    %69 = math.tanh %68 : vector<128x128xf32>
    %c0_38 = arith.constant 0 : index
    %c128_39 = arith.constant 128 : index
    %70 = vector.load %arg10[%c0_38, %c128_39] : memref<128x512xf32, #tpu.memory_space<vmem>>, vector<128x128xf32>
    tpu.vector_store %arg10[%c0_38, %c128_39], %69 {strides = array<i32>} : memref<128x512xf32, #tpu.memory_space<vmem>>, vector<128x128xf32>,
    %c0_40 = arith.constant 0 : index
    %c256_41 = arith.constant 256 : index
    %71 = vector.load %arg9[%c0_40, %c256_41] : memref<128x512xf32, #tpu.memory_space<vmem>>, vector<128x128xf32>
    %cst_42 = arith.constant dense<0.000000e+00> : vector<128x128xf32>
    %72 = tpu.matmul %56, %71, %cst_42 {dimension_numbers = #tpu.dot_dimension_numbers<[1], [0], [0], [1], [0, 0, 1, 1], [], []>} : vector<128x128xf32>, vector<128x128xf32>, vector<128x128xf32> -> vector<128x128xf32>
    %73 = vector.broadcast %58 : vector<128x1xf32> to vector<128x128xf32>
    %74 = arith.addf %72, %73 : vector<128x128xf32>
    %75 = math.tanh %74 : vector<128x128xf32>
    %c0_43 = arith.constant 0 : index
    %c256_44 = arith.constant 256 : index
    %76 = vector.load %arg10[%c0_43, %c256_44] : memref<128x512xf32, #tpu.memory_space<vmem>>, vector<128x128xf32>
    tpu.vector_store %arg10[%c0_43, %c256_44], %75 {strides = array<i32>} : memref<128x512xf32, #tpu.memory_space<vmem>>, vector<128x128xf32>,
    %c0_45 = arith.constant 0 : index
    %c384_46 = arith.constant 384 : index
    %77 = vector.load %arg9[%c0_45, %c384_46] : memref<128x512xf32, #tpu.memory_space<vmem>>, vector<128x128xf32>
    %cst_47 = arith.constant dense<0.000000e+00> : vector<128x128xf32>
    %78 = tpu.matmul %56, %77, %cst_47 {dimension_numbers = #tpu.dot_dimension_numbers<[1], [0], [0], [1], [0, 0, 1, 1], [], []>} : vector<128x128xf32>, vector<128x128xf32>, vector<128x128xf32> -> vector<128x128xf32>
    %79 = vector.broadcast %58 : vector<128x1xf32> to vector<128x128xf32>
    %80 = arith.addf %78, %79 : vector<128x128xf32>
    %81 = math.tanh %80 : vector<128x128xf32>
    %c0_48 = arith.constant 0 : index
    %c384_49 = arith.constant 384 : index
    %82 = vector.load %arg10[%c0_48, %c384_49] : memref<128x512xf32, #tpu.memory_space<vmem>>, vector<128x128xf32>
    tpu.vector_store %arg10[%c0_48, %c384_49], %81 {strides = array<i32>} : memref<128x512xf32, #tpu.memory_space<vmem>>, vector<128x128xf32>,
    %c1_50 = arith.constant 1 : index
    %c0_51 = arith.constant 0 : index
    %c0_52 = arith.constant 0 : index
    %83 = vector.load %arg4[%c1_50, %c0_51, %c0_52] : memref<2x128x128xf32, #tpu.memory_space<vmem>>, vector<1x128x128xf32>
    %84 = vector.shape_cast %83 : vector<1x128x128xf32> to vector<128x128xf32>
    %c1_53 = arith.constant 1 : index
    %c0_54 = arith.constant 0 : index
    %c0_55 = arith.constant 0 : index
    %85 = vector.load %arg5[%c1_53, %c0_54, %c0_55] : memref<2x128x1xf32, #tpu.memory_space<vmem>>, vector<1x128x1xf32>
    %86 = vector.shape_cast %85 : vector<1x128x1xf32> to vector<128x1xf32>
    %c0_56 = arith.constant 0 : index
    %c0_57 = arith.constant 0 : index
    %87 = vector.load %arg10[%c0_56, %c0_57] : memref<128x512xf32, #tpu.memory_space<vmem>>, vector<128x128xf32>
    %cst_58 = arith.constant dense<0.000000e+00> : vector<128x128xf32>
    %88 = tpu.matmul %84, %87, %cst_58 {dimension_numbers = #tpu.dot_dimension_numbers<[1], [0], [0], [1], [0, 0, 1, 1], [], []>} : vector<128x128xf32>, vector<128x128xf32>, vector<128x128xf32> -> vector<128x128xf32>
    %89 = vector.broadcast %86 : vector<128x1xf32> to vector<128x128xf32>
    %90 = arith.addf %88, %89 : vector<128x128xf32>
    %91 = math.tanh %90 : vector<128x128xf32>
    %c0_59 = arith.constant 0 : index
    %c0_60 = arith.constant 0 : index
    %92 = vector.load %arg9[%c0_59, %c0_60] : memref<128x512xf32, #tpu.memory_space<vmem>>, vector<128x128xf32>
    tpu.vector_store %arg9[%c0_59, %c0_60], %91 {strides = array<i32>} : memref<128x512xf32, #tpu.memory_space<vmem>>, vector<128x128xf32>,
    %c0_61 = arith.constant 0 : index
    %c128_62 = arith.constant 128 : index
    %93 = vector.load %arg10[%c0_61, %c128_62] : memref<128x512xf32, #tpu.memory_space<vmem>>, vector<128x128xf32>
    %cst_63 = arith.constant dense<0.000000e+00> : vector<128x128xf32>
    %94 = tpu.matmul %84, %93, %cst_63 {dimension_numbers = #tpu.dot_dimension_numbers<[1], [0], [0], [1], [0, 0, 1, 1], [], []>} : vector<128x128xf32>, vector<128x128xf32>, vector<128x128xf32> -> vector<128x128xf32>
    %95 = vector.broadcast %86 : vector<128x1xf32> to vector<128x128xf32>
    %96 = arith.addf %94, %95 : vector<128x128xf32>
    %97 = math.tanh %96 : vector<128x128xf32>
    %c0_64 = arith.constant 0 : index
    %c128_65 = arith.constant 128 : index
    %98 = vector.load %arg9[%c0_64, %c128_65] : memref<128x512xf32, #tpu.memory_space<vmem>>, vector<128x128xf32>
    tpu.vector_store %arg9[%c0_64, %c128_65], %97 {strides = array<i32>} : memref<128x512xf32, #tpu.memory_space<vmem>>, vector<128x128xf32>,
    %c0_66 = arith.constant 0 : index
    %c256_67 = arith.constant 256 : index
    %99 = vector.load %arg10[%c0_66, %c256_67] : memref<128x512xf32, #tpu.memory_space<vmem>>, vector<128x128xf32>
    %cst_68 = arith.constant dense<0.000000e+00> : vector<128x128xf32>
    %100 = tpu.matmul %84, %99, %cst_68 {dimension_numbers = #tpu.dot_dimension_numbers<[1], [0], [0], [1], [0, 0, 1, 1], [], []>} : vector<128x128xf32>, vector<128x128xf32>, vector<128x128xf32> -> vector<128x128xf32>
    %101 = vector.broadcast %86 : vector<128x1xf32> to vector<128x128xf32>
    %102 = arith.addf %100, %101 : vector<128x128xf32>
    %103 = math.tanh %102 : vector<128x128xf32>
    %c0_69 = arith.constant 0 : index
    %c256_70 = arith.constant 256 : index
    %104 = vector.load %arg9[%c0_69, %c256_70] : memref<128x512xf32, #tpu.memory_space<vmem>>, vector<128x128xf32>
    tpu.vector_store %arg9[%c0_69, %c256_70], %103 {strides = array<i32>} : memref<128x512xf32, #tpu.memory_space<vmem>>, vector<128x128xf32>,
    %c0_71 = arith.constant 0 : index
    %c384_72 = arith.constant 384 : index
    %105 = vector.load %arg10[%c0_71, %c384_72] : memref<128x512xf32, #tpu.memory_space<vmem>>, vector<128x128xf32>
    %cst_73 = arith.constant dense<0.000000e+00> : vector<128x128xf32>
    %106 = tpu.matmul %84, %105, %cst_73 {dimension_numbers = #tpu.dot_dimension_numbers<[1], [0], [0], [1], [0, 0, 1, 1], [], []>} : vector<128x128xf32>, vector<128x128xf32>, vector<128x128xf32> -> vector<128x128xf32>
    %107 = vector.broadcast %86 : vector<128x1xf32> to vector<128x128xf32>
    %108 = arith.addf %106, %107 : vector<128x128xf32>
    %109 = math.tanh %108 : vector<128x128xf32>
    %c0_74 = arith.constant 0 : index
    %c384_75 = arith.constant 384 : index
    %110 = vector.load %arg9[%c0_74, %c384_75] : memref<128x512xf32, #tpu.memory_space<vmem>>, vector<128x128xf32>
    tpu.vector_store %arg9[%c0_74, %c384_75], %109 {strides = array<i32>} : memref<128x512xf32, #tpu.memory_space<vmem>>, vector<128x128xf32>,
    %c0_76 = arith.constant 0 : index
    %c0_77 = arith.constant 0 : index
    %111 = vector.load %arg6[%c0_76, %c0_77] : memref<128x1xf32, #tpu.memory_space<vmem>>, vector<128x1xf32>
    %c0_78 = arith.constant 0 : index
    %c0_79 = arith.constant 0 : index
    %112 = vector.load %arg7[%c0_78, %c0_79] : memref<1x1xf32, #tpu.memory_space<vmem>>, vector<1x1xf32>
    %c0_80 = arith.constant 0 : index
    %c0_81 = arith.constant 0 : index
    %113 = vector.load %arg9[%c0_80, %c0_81] : memref<128x512xf32, #tpu.memory_space<vmem>>, vector<128x128xf32>
    %114 = vector.broadcast %111 : vector<128x1xf32> to vector<128x128xf32>
    %115 = arith.mulf %113, %114 : vector<128x128xf32>
    %cst_82 = arith.constant dense<0.000000e+00> : vector<128xf32>
    %116 = vector.multi_reduction <add>, %115, %cst_82 [0] : vector<128x128xf32> to vector<128xf32>
    %117 = vector.shape_cast %116 : vector<128xf32> to vector<1x128xf32>
    %118 = vector.broadcast %112 : vector<1x1xf32> to vector<1x128xf32>
    %119 = arith.addf %117, %118 : vector<1x128xf32>
    %c0_83 = arith.constant 0 : index
    %c0_84 = arith.constant 0 : index
    %120 = vector.load %arg8[%c0_83, %c0_84] : memref<1x512xf32, #tpu.memory_space<vmem>>, vector<1x128xf32>
    tpu.vector_store %arg8[%c0_83, %c0_84], %119 {strides = array<i32>} : memref<1x512xf32, #tpu.memory_space<vmem>>, vector<1x128xf32>,
    %c0_85 = arith.constant 0 : index
    %c128_86 = arith.constant 128 : index
    %121 = vector.load %arg9[%c0_85, %c128_86] : memref<128x512xf32, #tpu.memory_space<vmem>>, vector<128x128xf32>
    %122 = vector.broadcast %111 : vector<128x1xf32> to vector<128x128xf32>
    %123 = arith.mulf %121, %122 : vector<128x128xf32>
    %cst_87 = arith.constant dense<0.000000e+00> : vector<128xf32>
    %124 = vector.multi_reduction <add>, %123, %cst_87 [0] : vector<128x128xf32> to vector<128xf32>
    %125 = vector.shape_cast %124 : vector<128xf32> to vector<1x128xf32>
    %126 = vector.broadcast %112 : vector<1x1xf32> to vector<1x128xf32>
    %127 = arith.addf %125, %126 : vector<1x128xf32>
    %c0_88 = arith.constant 0 : index
    %c128_89 = arith.constant 128 : index
    %128 = vector.load %arg8[%c0_88, %c128_89] : memref<1x512xf32, #tpu.memory_space<vmem>>, vector<1x128xf32>
    tpu.vector_store %arg8[%c0_88, %c128_89], %127 {strides = array<i32>} : memref<1x512xf32, #tpu.memory_space<vmem>>, vector<1x128xf32>,
    %c0_90 = arith.constant 0 : index
    %c256_91 = arith.constant 256 : index
    %129 = vector.load %arg9[%c0_90, %c256_91] : memref<128x512xf32, #tpu.memory_space<vmem>>, vector<128x128xf32>
    %130 = vector.broadcast %111 : vector<128x1xf32> to vector<128x128xf32>
    %131 = arith.mulf %129, %130 : vector<128x128xf32>
    %cst_92 = arith.constant dense<0.000000e+00> : vector<128xf32>
    %132 = vector.multi_reduction <add>, %131, %cst_92 [0] : vector<128x128xf32> to vector<128xf32>
    %133 = vector.shape_cast %132 : vector<128xf32> to vector<1x128xf32>
    %134 = vector.broadcast %112 : vector<1x1xf32> to vector<1x128xf32>
    %135 = arith.addf %133, %134 : vector<1x128xf32>
    %c0_93 = arith.constant 0 : index
    %c256_94 = arith.constant 256 : index
    %136 = vector.load %arg8[%c0_93, %c256_94] : memref<1x512xf32, #tpu.memory_space<vmem>>, vector<1x128xf32>
    tpu.vector_store %arg8[%c0_93, %c256_94], %135 {strides = array<i32>} : memref<1x512xf32, #tpu.memory_space<vmem>>, vector<1x128xf32>,
    %c0_95 = arith.constant 0 : index
    %c384_96 = arith.constant 384 : index
    %137 = vector.load %arg9[%c0_95, %c384_96] : memref<128x512xf32, #tpu.memory_space<vmem>>, vector<128x128xf32>
    %138 = vector.broadcast %111 : vector<128x1xf32> to vector<128x128xf32>
    %139 = arith.mulf %137, %138 : vector<128x128xf32>
    %cst_97 = arith.constant dense<0.000000e+00> : vector<128xf32>
    %140 = vector.multi_reduction <add>, %139, %cst_97 [0] : vector<128x128xf32> to vector<128xf32>
    %141 = vector.shape_cast %140 : vector<128xf32> to vector<1x128xf32>
    %142 = vector.broadcast %112 : vector<1x1xf32> to vector<1x128xf32>
    %143 = arith.addf %141, %142 : vector<1x128xf32>
    %c0_98 = arith.constant 0 : index
    %c384_99 = arith.constant 384 : index
    %144 = vector.load %arg8[%c0_98, %c384_99] : memref<1x512xf32, #tpu.memory_space<vmem>>, vector<1x128xf32>
    tpu.vector_store %arg8[%c0_98, %c384_99], %143 {strides = array<i32>} : memref<1x512xf32, #tpu.memory_space<vmem>>, vector<1x128xf32>,
    return
  }
  func.func @transform_0(%arg0: i32) -> (i32, i32) {
    %c0_i32 = arith.constant 0 : i32
    %c0_i32_0 = arith.constant 0 : i32
    return %c0_i32, %arg0 : i32, i32
  }
  func.func @transform_1(%arg0: i32) -> (i32, i32) {
    %c0_i32 = arith.constant 0 : i32
    %c0_i32_0 = arith.constant 0 : i32
    %c0_i32_1 = arith.constant 0 : i32
    return %c0_i32, %c0_i32_0 : i32, i32
  }
  func.func @transform_2(%arg0: i32) -> (i32, i32) {
    %c0_i32 = arith.constant 0 : i32
    %c0_i32_0 = arith.constant 0 : i32
    %c0_i32_1 = arith.constant 0 : i32
    return %c0_i32, %c0_i32_0 : i32, i32
  }
  func.func @transform_3(%arg0: i32) -> (i32, i32, i32) {
    %c0_i32 = arith.constant 0 : i32
    %c0_i32_0 = arith.constant 0 : i32
    %c0_i32_1 = arith.constant 0 : i32
    %c0_i32_2 = arith.constant 0 : i32
    return %c0_i32, %c0_i32_0, %c0_i32_1 : i32, i32, i32
  }
  func.func @transform_4(%arg0: i32) -> (i32, i32, i32) {
    %c0_i32 = arith.constant 0 : i32
    %c0_i32_0 = arith.constant 0 : i32
    %c0_i32_1 = arith.constant 0 : i32
    %c0_i32_2 = arith.constant 0 : i32
    return %c0_i32, %c0_i32_0, %c0_i32_1 : i32, i32, i32
  }
  func.func @transform_5(%arg0: i32) -> (i32, i32) {
    %c0_i32 = arith.constant 0 : i32
    %c0_i32_0 = arith.constant 0 : i32
    %c0_i32_1 = arith.constant 0 : i32
    return %c0_i32, %c0_i32_0 : i32, i32
  }
  func.func @transform_6(%arg0: i32) -> (i32, i32) {
    %c0_i32 = arith.constant 0 : i32
    %c0_i32_0 = arith.constant 0 : i32
    %c0_i32_1 = arith.constant 0 : i32
    return %c0_i32, %c0_i32_0 : i32, i32
  }
  func.func @transform_7(%arg0: i32) -> (i32, i32) {
    %c0_i32 = arith.constant 0 : i32
    %c0_i32_0 = arith.constant 0 : i32
    return %c0_i32, %arg0 : i32, i32
  }
}

</mosaic_0001>

<llo_original>
// kernel: tpu_custom_call.1
$region0: #{tpu_custom_call.1}
  #allocation0 [shape = 'u32[]', space=smem, size = 0x4, offset = 0x4, fixed_abs, tag = 'smem constant byte address 0x4 - core index']
  #allocation1 [shape = 'u32[72,128]{1,0:T(1,128)}', space=vmem, size = 0x9000, scoped, tag = 'internal scratch']
  #allocation2 [shape = 'f32[128,512]{1,0:T(8,128)}', space=vmem, size = 0x40000, scoped, tag = 'scratch operand']
  #allocation3 [shape = 'f32[128,512]{1,0:T(8,128)}', space=vmem, size = 0x40000, scoped, tag = 'scratch operand']
  #allocation4 [shape = 'f32[1,1]{1,0:T(1,128)S(1)}', space=vmem, size = 0x200, scoped, tag = 'scoped memory for tpu_custom_call.1']
  %s0 = inlined_call_operand.vmem [shape: f32[2,1024], index: 0, kind: input, shape index: {}]
  %s1 = inlined_call_operand.vmem [shape: f32[128,2], index: 1, kind: input, shape index: {}]
  %s2 = inlined_call_operand.vmem [shape: f32[128,1], index: 2, kind: input, shape index: {}]
  %s3 = inlined_call_operand.vmem [shape: f32[2,128,128], index: 3, kind: input, shape index: {}]
  %s4 = inlined_call_operand.vmem [shape: f32[2,128,1], index: 4, kind: input, shape index: {}]
  %s5 = inlined_call_operand.vmem [shape: f32[128,1], index: 5, kind: input, shape index: {}]
  %s6 = inlined_call_operand.<no memory space> [shape: f32[1,1], index: 6, kind: input, shape index: {}]
  %s7 = inlined_call_operand.hbm [shape: f32[1,1024], index: 7, kind: output, shape index: {}]
  %s8 = sld [smem:[#allocation0]]
  $region61: #{tpu_custom_call.1} parent=0
    _
  %s10 = ssub.s32 1, %s8
  %s11 = scalar_select 0, %s10, %s8
  %v12 = vstv %s6
  %13 = vst [vmem:[#allocation4] sm:$0x1] %v12
  $region1: #{tpu_custom_call.1} parent=0
    #allocation5 [shape = 'u8[4096]{0}', space=vmem, size = 0x1000, scoped, tag = 'output window, operand 0']
    #allocation6 [shape = 's32[2]{0}', space=sflag, size = 0x8, scoped, tag = 'scoped memory for tpu_custom_call.1']
    %14 = vsyncpa [#allocation6], 0
    %s15 = scalar_lea.sflag [#allocation6], 1
    %16 = vsyncpa %s15, 0
    loop: start=0, step=1, limit=4
    $region2: #{tpu_custom_call.1} parent=1 // loop_pre_header
      _
    $region3: #{tpu_custom_call.1} parent=1 // loop_header
      %s18 = sphi 0, %s22
      %p19 = scmp.ge.s32.totalorder %s18, 4
      %s28 = sphi 0, %s30
      %s31 = sphi 0, %s28
      %s32 = sphi 0, %s31
      %s48 = sphi 0, %s32
      %s52 = sphi 0, %s52
      %s54 = sphi 0, %s52
      %s55 = sphi 0, %s54
      %s69 = sphi 0, %s55
      %s73 = sphi 0, %s73
      %s75 = sphi 0, %s73
      %s76 = sphi 0, %s75
      %s90 = sphi 0, %s76
      %s94 = sphi 0, %s94
      %s96 = sphi 0, %s94
      %s97 = sphi 0, %s96
      %s111 = sphi 0, %s97
      %s115 = sphi 0, %s115
      %s117 = sphi 0, %s115
      %s118 = sphi 0, %s117
      %s132 = sphi 0, %s118
      %s136 = sphi 0, %s136
      %s138 = sphi 0, %s136
      %s139 = sphi 0, %s138
      %s153 = sphi 0, %s139
      %s157 = sphi 0, %s157
      %s159 = sphi 0, %s157
      %s160 = sphi 0, %s159
      %s174 = sphi 0, %s160
      %s180 = sphi 0, %s182
      %s183 = sphi 0, %s180
      %s184 = sphi 0, %s183
      %s200 = sphi 0, %s184
    $region4: #{tpu_custom_call.1} parent=1 // loop_header_branch
      %21 = sbr.rel (%p19) target = $region8
    $region5: #{tpu_custom_call.1} parent=1 // loop_body
      %s23 = ssub.s32 %s18, 1
      %s24 = ssub.s32 %s18, 2
      %s25 = sadd.s32 %s18, 1
      %s26 = ssub.s32 %s18, %s25
      %p27 = scmp.eq.s32.totalorder %s26, 0
      %s29 = sadd.s32 %s28, 1
      %s30 = scalar_select %p27, %s28, %s29
      %p33 = pneg %p27
      %p34 = scmp.eq.s32.totalorder %s18, 1
      %p35 = por %p33, %p34
      %p36 = scmp.ne.s32.totalorder %s28, %s31
      %p37 = scmp.eq.s32.totalorder %s18, 0
      %p38 = por %p36, %p37
      %p39 = scmp.ne.s32.totalorder %s28, %s31
      %p40 = scmp.eq.s32.totalorder %s23, 1
      %p41 = por %p39, %p40
      %p42 = scmp.ne.s32.totalorder %s31, %s32
      %p43 = scmp.eq.s32.totalorder %s23, 0
      %p44 = por %p42, %p43
      %p45 = scmp.ne.s32.totalorder %s31, %s32
      %p46 = scmp.eq.s32.totalorder %s24, 1
      %p47 = por %p45, %p46
      %p49 = scmp.ne.s32.totalorder %s32, %s48
      %p50 = scmp.eq.s32.totalorder %s24, 0
      %p51 = por %p49, %p50
      %s53 = sadd.s32 %s52, 1
      %p56 = scmp.eq.s32.totalorder %s18, 1
      %p57 = scmp.ne.s32.totalorder %s52, %s54
      %p58 = scmp.eq.s32.totalorder %s18, 0
      %p59 = por %p57, %p58
      %p60 = scmp.ne.s32.totalorder %s52, %s54
      %p61 = scmp.eq.s32.totalorder %s23, 1
      %p62 = por %p60, %p61
      %p63 = scmp.ne.s32.totalorder %s54, %s55
      %p64 = scmp.eq.s32.totalorder %s23, 0
      %p65 = por %p63, %p64
      %p66 = scmp.ne.s32.totalorder %s54, %s55
      %p67 = scmp.eq.s32.totalorder %s24, 1
      %p68 = por %p66, %p67
      %p70 = scmp.ne.s32.totalorder %s55, %s69
      %p71 = scmp.eq.s32.totalorder %s24, 0
      %p72 = por %p70, %p71
      %s74 = sadd.s32 %s73, 1
      %p77 = scmp.eq.s32.totalorder %s18, 1
      %p78 = scmp.ne.s32.totalorder %s73, %s75
      %p79 = scmp.eq.s32.totalorder %s18, 0
      %p80 = por %p78, %p79
      %p81 = scmp.ne.s32.totalorder %s73, %s75
      %p82 = scmp.eq.s32.totalorder %s23, 1
      %p83 = por %p81, %p82
      %p84 = scmp.ne.s32.totalorder %s75, %s76
      %p85 = scmp.eq.s32.totalorder %s23, 0
      %p86 = por %p84, %p85
      %p87 = scmp.ne.s32.totalorder %s75, %s76
      %p88 = scmp.eq.s32.totalorder %s24, 1
      %p89 = por %p87, %p88
      %p91 = scmp.ne.s32.totalorder %s76, %s90
      %p92 = scmp.eq.s32.totalorder %s24, 0
      %p93 = por %p91, %p92
      %s95 = sadd.s32 %s94, 1
      %p98 = scmp.eq.s32.totalorder %s18, 1
      %p99 = scmp.ne.s32.totalorder %s94, %s96
      %p100 = scmp.eq.s32.totalorder %s18, 0
      %p101 = por %p99, %p100
      %p102 = scmp.ne.s32.totalorder %s94, %s96
      %p103 = scmp.eq.s32.totalorder %s23, 1
      %p104 = por %p102, %p103
      %p105 = scmp.ne.s32.totalorder %s96, %s97
      %p106 = scmp.eq.s32.totalorder %s23, 0
      %p107 = por %p105, %p106
      %p108 = scmp.ne.s32.totalorder %s96, %s97
      %p109 = scmp.eq.s32.totalorder %s24, 1
      %p110 = por %p108, %p109
      %p112 = scmp.ne.s32.totalorder %s97, %s111
      %p113 = scmp.eq.s32.totalorder %s24, 0
      %p114 = por %p112, %p113
      %s116 = sadd.s32 %s115, 1
      %p119 = scmp.eq.s32.totalorder %s18, 1
      %p120 = scmp.ne.s32.totalorder %s115, %s117
      %p121 = scmp.eq.s32.totalorder %s18, 0
      %p122 = por %p120, %p121
      %p123 = scmp.ne.s32.totalorder %s115, %s117
      %p124 = scmp.eq.s32.totalorder %s23, 1
      %p125 = por %p123, %p124
      %p126 = scmp.ne.s32.totalorder %s117, %s118
      %p127 = scmp.eq.s32.totalorder %s23, 0
      %p128 = por %p126, %p127
      %p129 = scmp.ne.s32.totalorder %s117, %s118
      %p130 = scmp.eq.s32.totalorder %s24, 1
      %p131 = por %p129, %p130
      %p133 = scmp.ne.s32.totalorder %s118, %s132
      %p134 = scmp.eq.s32.totalorder %s24, 0
      %p135 = por %p133, %p134
      %s137 = sadd.s32 %s136, 1
      %p140 = scmp.eq.s32.totalorder %s18, 1
      %p141 = scmp.ne.s32.totalorder %s136, %s138
      %p142 = scmp.eq.s32.totalorder %s18, 0
      %p143 = por %p141, %p142
      %p144 = scmp.ne.s32.totalorder %s136, %s138
      %p145 = scmp.eq.s32.totalorder %s23, 1
      %p146 = por %p144, %p145
      %p147 = scmp.ne.s32.totalorder %s138, %s139
      %p148 = scmp.eq.s32.totalorder %s23, 0
      %p149 = por %p147, %p148
      %p150 = scmp.ne.s32.totalorder %s138, %s139
      %p151 = scmp.eq.s32.totalorder %s24, 1
      %p152 = por %p150, %p151
      %p154 = scmp.ne.s32.totalorder %s139, %s153
      %p155 = scmp.eq.s32.totalorder %s24, 0
      %p156 = por %p154, %p155
      %s158 = sadd.s32 %s157, 1
      %p161 = scmp.eq.s32.totalorder %s18, 1
      %p162 = scmp.ne.s32.totalorder %s157, %s159
      %p163 = scmp.eq.s32.totalorder %s18, 0
      %p164 = por %p162, %p163
      %p165 = scmp.ne.s32.totalorder %s157, %s159
      %p166 = scmp.eq.s32.totalorder %s23, 1
      %p167 = por %p165, %p166
      %p168 = scmp.ne.s32.totalorder %s159, %s160
      %p169 = scmp.eq.s32.totalorder %s23, 0
      %p170 = por %p168, %p169
      %p171 = scmp.ne.s32.totalorder %s159, %s160
      %p172 = scmp.eq.s32.totalorder %s24, 1
      %p173 = por %p171, %p172
      %p175 = scmp.ne.s32.totalorder %s160, %s174
      %p176 = scmp.eq.s32.totalorder %s24, 0
      %p177 = por %p175, %p176
      %s178 = ssub.s32 %s18, %s25
      %p179 = scmp.eq.s32.totalorder %s178, 0
      %s181 = sadd.s32 %s180, 1
      %s182 = scalar_select %p179, %s180, %s181
      %p185 = pneg %p179
      %p186 = scmp.eq.s32.totalorder %s18, 1
      %p187 = por %p185, %p186
      %p188 = scmp.ne.s32.totalorder %s180, %s183
      %p189 = scmp.eq.s32.totalorder %s18, 0
      %p190 = por %p188, %p189
      %p191 = scmp.ne.s32.totalorder %s180, %s183
      %p192 = scmp.eq.s32.totalorder %s23, 1
      %p193 = por %p191, %p192
      %p194 = scmp.ne.s32.totalorder %s183, %s184
      %p195 = scmp.eq.s32.totalorder %s23, 0
      %p196 = por %p194, %p195
      %p197 = scmp.ne.s32.totalorder %s183, %s184
      %p198 = scmp.eq.s32.totalorder %s24, 1
      %p199 = por %p197, %p198
      %p201 = scmp.ne.s32.totalorder %s184, %s200
      %p202 = scmp.eq.s32.totalorder %s24, 0
      %p203 = por %p201, %p202
      %p204 = scmp.le.s32.totalorder 1, %s18
      %p205 = scmp.lt.s32.totalorder %s18, 3
      %p206 = pnand %p204, %p205
      %p207 = pneg %p206
      // Predicated region
      $region9: #{tpu_custom_call.1} parent=5 // pred_check
        _
      $region10: #{tpu_custom_call.1} parent=5 // pred_check_branch
        %209 = sbr.rel (%p206) target = $region12
      $region11: #{tpu_custom_call.1} parent=5 // pred_region
        %s210 = ssub.s32 %s18, 1
        // Predicated region
        $region13: #{tpu_custom_call.1} parent=11 // pred_check
          %p211 = pneg %p65
        $region14: #{tpu_custom_call.1} parent=11 // pred_check_branch
          %213 = sbr.rel (%p211) target = $region16
        $region15: #{tpu_custom_call.1} parent=11 // pred_region
          _
        $region16: #{tpu_custom_call.1} parent=11 // pred_fallthru
          _
        // Predicated region
        $region17: #{tpu_custom_call.1} parent=11 // pred_check
          %p214 = pneg %p86
        $region18: #{tpu_custom_call.1} parent=11 // pred_check_branch
          %216 = sbr.rel (%p214) target = $region20
        $region19: #{tpu_custom_call.1} parent=11 // pred_region
          _
        $region20: #{tpu_custom_call.1} parent=11 // pred_fallthru
          _
        // Predicated region
        $region21: #{tpu_custom_call.1} parent=11 // pred_check
          %p217 = pneg %p107
        $region22: #{tpu_custom_call.1} parent=11 // pred_check_branch
          %219 = sbr.rel (%p217) target = $region24
        $region23: #{tpu_custom_call.1} parent=11 // pred_region
          _
        $region24: #{tpu_custom_call.1} parent=11 // pred_fallthru
          _
        // Predicated region
        $region25: #{tpu_custom_call.1} parent=11 // pred_check
          %p220 = pneg %p128
        $region26: #{tpu_custom_call.1} parent=11 // pred_check_branch
          %222 = sbr.rel (%p220) target = $region28
        $region27: #{tpu_custom_call.1} parent=11 // pred_region
          _
        $region28: #{tpu_custom_call.1} parent=11 // pred_fallthru
          _
        // Predicated region
        $region29: #{tpu_custom_call.1} parent=11 // pred_check
          %p223 = pneg %p149
        $region30: #{tpu_custom_call.1} parent=11 // pred_check_branch
          %225 = sbr.rel (%p223) target = $region32
        $region31: #{tpu_custom_call.1} parent=11 // pred_region
          _
        $region32: #{tpu_custom_call.1} parent=11 // pred_fallthru
          _
        // Predicated region
        $region33: #{tpu_custom_call.1} parent=11 // pred_check
          %p226 = pneg %p170
        $region34: #{tpu_custom_call.1} parent=11 // pred_check_branch
          %228 = sbr.rel (%p226) target = $region36
        $region35: #{tpu_custom_call.1} parent=11 // pred_region
          _
        $region36: #{tpu_custom_call.1} parent=11 // pred_fallthru
          _
      $region12: #{tpu_custom_call.1} parent=5 // pred_fallthru
        _
      %p229 = scmp.lt.s32.totalorder %s18, 2
      // Predicated region
      $region37: #{tpu_custom_call.1} parent=5 // pred_check
        %p230 = pneg %p229
      $region38: #{tpu_custom_call.1} parent=5 // pred_check_branch
        %232 = sbr.rel (%p230) target = $region40
      $region39: #{tpu_custom_call.1} parent=5 // pred_region
        // Predicated region
        $region41: #{tpu_custom_call.1} parent=39 // pred_check
          %p233 = pneg %p38
        $region42: #{tpu_custom_call.1} parent=39 // pred_check_branch
          %235 = sbr.rel (%p233) target = $region44
        $region43: #{tpu_custom_call.1} parent=39 // pred_region
          %s236 = smul.u32 4, %s18
          %p237 = scmp.lt.s32.totalorder %s236, 7
          %s238 = scalar_select %p237, %s236, 7
          %s239 = smul.addr %s238, 2
          %s240 = scalar_lea.vmem %s0, %s239
          %s241 = smul.u32 4, %s18
        $region44: #{tpu_custom_call.1} parent=39 // pred_fallthru
          _
      $region40: #{tpu_custom_call.1} parent=5 // pred_fallthru
        _
      %p242 = scmp.le.s32.totalorder 1, %s18
      %p243 = scmp.lt.s32.totalorder %s18, 3
      %p244 = pnand %p242, %p243
      %p245 = pneg %p244
      // Predicated region
      $region45: #{tpu_custom_call.1} parent=5 // pred_check
        _
      $region46: #{tpu_custom_call.1} parent=5 // pred_check_branch
        %247 = sbr.rel (%p244) target = $region48
      $region47: #{tpu_custom_call.1} parent=5 // pred_region
        %s248 = ssub.s32 %s18, 1
        %s249 = smul.u32 4, %s23
        %p250 = scmp.lt.s32.totalorder %s249, 7
        %s251 = scalar_select %p250, %s249, 7
        %s252 = smul.addr %s251, 2
        %s253 = scalar_lea.vmem %s0, %s252
        %p254 = pneg %p44
        %p255 = pneg %p41
        %p256 = pneg %p65
        %p257 = pneg %p62
        %p258 = pneg %p86
        %p259 = pneg %p83
        %p260 = pneg %p107
        %p261 = pneg %p104
        %p262 = pneg %p128
        %p263 = pneg %p125
        %p264 = pneg %p149
        %p265 = pneg %p146
        %p266 = pneg %p170
        %p267 = pneg %p167
        %p268 = pneg %p196
        %p269 = pneg %p193
        %s270 = sand.u32 %s183, 1
        %s271 = scalar_lea.sflag [#allocation6], %s270
        %s272 = sand.u32 %s183, 1
        %s273 = smul.addr %s272, 4
        %s274 = scalar_lea.vmem [#allocation5], %s273
        %s275 = smul.u32 4, %s23
        %p276 = scmp.lt.s32.totalorder %s275, 7
        %s277 = scalar_select %p276, %s275, 7
        %s278 = smul.addr %s277, 2
        %s279 = scalar_lea.vmem %s0, %s278
        %s280 = smul.u32 4, %s23
        %s281 = smul.u32 4, %s23
        %v282 = vld [vmem:[%s2] sm:$0xff]
        %v283 = vld [vmem:[%s2 + $0x8] sm:$0xff]
        %v284 = vld [vmem:[%s2 + $0x10] sm:$0xff]
        %v285 = vld [vmem:[%s2 + $0x18] sm:$0xff]
        %v286 = vld [vmem:[%s2 + $0x20] sm:$0xff]
        %v287 = vld [vmem:[%s2 + $0x28] sm:$0xff]
        %v288 = vld [vmem:[%s2 + $0x30] sm:$0xff]
        %v289 = vld [vmem:[%s2 + $0x38] sm:$0xff]
        %v290 = vld [vmem:[%s2 + $0x40] sm:$0xff]
        %v291 = vld [vmem:[%s2 + $0x48] sm:$0xff]
        %v292 = vld [vmem:[%s2 + $0x50] sm:$0xff]
        %v293 = vld [vmem:[%s2 + $0x58] sm:$0xff]
        %v294 = vld [vmem:[%s2 + $0x60] sm:$0xff]
        %v295 = vld [vmem:[%s2 + $0x68] sm:$0xff]
        %v296 = vld [vmem:[%s2 + $0x70] sm:$0xff]
        %v297 = vld [vmem:[%s2 + $0x78] sm:$0xff]
        %v298 = vld [vmem:[%s1] sm:$0xff]
        %v299 = vld [vmem:[%s1 + $0x8] sm:$0xff]
        %v300 = vld [vmem:[%s1 + $0x10] sm:$0xff]
        %v301 = vld [vmem:[%s1 + $0x18] sm:$0xff]
        %v302 = vld [vmem:[%s1 + $0x20] sm:$0xff]
        %v303 = vld [vmem:[%s1 + $0x28] sm:$0xff]
        %v304 = vld [vmem:[%s1 + $0x30] sm:$0xff]
        %v305 = vld [vmem:[%s1 + $0x38] sm:$0xff]
        %v306 = vld [vmem:[%s1 + $0x40] sm:$0xff]
        %v307 = vld [vmem:[%s1 + $0x48] sm:$0xff]
        %v308 = vld [vmem:[%s1 + $0x50] sm:$0xff]
        %v309 = vld [vmem:[%s1 + $0x58] sm:$0xff]
        %v310 = vld [vmem:[%s1 + $0x60] sm:$0xff]
        %v311 = vld [vmem:[%s1 + $0x68] sm:$0xff]
        %v312 = vld [vmem:[%s1 + $0x70] sm:$0xff]
        %v313 = vld [vmem:[%s1 + $0x78] sm:$0xff]
        %v314 = vld [vmem:[%s279] sm:$0x1]
        %316 = vset.pattern.permute.xlu0 0
        %317 = vperm.xlu0 %316, %v298
        %v318 = vpop.permute.xlu0 %317
        %321 = vset.pattern.permute.xlu0 0
        %322 = vperm.xlu0 %321, %v299
        %v323 = vpop.permute.xlu0 %322
        %326 = vset.pattern.permute.xlu0 0
        %327 = vperm.xlu0 %326, %v300
        %v328 = vpop.permute.xlu0 %327
        %331 = vset.pattern.permute.xlu0 0
        %332 = vperm.xlu0 %331, %v301
        %v333 = vpop.permute.xlu0 %332
        %336 = vset.pattern.permute.xlu0 0
        %337 = vperm.xlu0 %336, %v302
        %v338 = vpop.permute.xlu0 %337
        %341 = vset.pattern.permute.xlu0 0
        %342 = vperm.xlu0 %341, %v303
        %v343 = vpop.permute.xlu0 %342
        %346 = vset.pattern.permute.xlu0 0
        %347 = vperm.xlu0 %346, %v304
        %v348 = vpop.permute.xlu0 %347
        %351 = vset.pattern.permute.xlu0 0
        %352 = vperm.xlu0 %351, %v305
        %v353 = vpop.permute.xlu0 %352
        %356 = vset.pattern.permute.xlu0 0
        %357 = vperm.xlu0 %356, %v306
        %v358 = vpop.permute.xlu0 %357
        %361 = vset.pattern.permute.xlu0 0
        %362 = vperm.xlu0 %361, %v307
        %v363 = vpop.permute.xlu0 %362
        %366 = vset.pattern.permute.xlu0 0
        %367 = vperm.xlu0 %366, %v308
        %v368 = vpop.permute.xlu0 %367
        %371 = vset.pattern.permute.xlu0 0
        %372 = vperm.xlu0 %371, %v309
        %v373 = vpop.permute.xlu0 %372
        %376 = vset.pattern.permute.xlu0 0
        %377 = vperm.xlu0 %376, %v310
        %v378 = vpop.permute.xlu0 %377
        %381 = vset.pattern.permute.xlu0 0
        %382 = vperm.xlu0 %381, %v311
        %v383 = vpop.permute.xlu0 %382
        %386 = vset.pattern.permute.xlu0 0
        %387 = vperm.xlu0 %386, %v312
        %v388 = vpop.permute.xlu0 %387
        %391 = vset.pattern.permute.xlu0 0
        %392 = vperm.xlu0 %391, %v313
        %v393 = vpop.permute.xlu0 %392
        %v395 = vperm.slane %v314, 0
        %v396 = vmul.f32 %v318, %v395
        %v397 = vmul.f32 %v323, %v395
        %v398 = vmul.f32 %v328, %v395
        %v399 = vmul.f32 %v333, %v395
        %v400 = vmul.f32 %v338, %v395
        %v401 = vmul.f32 %v343, %v395
        %v402 = vmul.f32 %v348, %v395
        %v403 = vmul.f32 %v353, %v395
        %v404 = vmul.f32 %v358, %v395
        %v405 = vmul.f32 %v363, %v395
        %v406 = vmul.f32 %v368, %v395
        %v407 = vmul.f32 %v373, %v395
        %v408 = vmul.f32 %v378, %v395
        %v409 = vmul.f32 %v383, %v395
        %v410 = vmul.f32 %v388, %v395
        %v411 = vmul.f32 %v393, %v395
        %v412 = vld [vmem:[%s279 + $0x1] sm:$0x1]
        %413 = vset.pattern.permute.xlu0 1
        %414 = vperm.xlu0 %413, %v298
        %v415 = vpop.permute.xlu0 %414
        %417 = vset.pattern.permute.xlu0 1
        %418 = vperm.xlu0 %417, %v299
        %v419 = vpop.permute.xlu0 %418
        %421 = vset.pattern.permute.xlu0 1
        %422 = vperm.xlu0 %421, %v300
        %v423 = vpop.permute.xlu0 %422
        %425 = vset.pattern.permute.xlu0 1
        %426 = vperm.xlu0 %425, %v301
        %v427 = vpop.permute.xlu0 %426
        %429 = vset.pattern.permute.xlu0 1
        %430 = vperm.xlu0 %429, %v302
        %v431 = vpop.permute.xlu0 %430
        %433 = vset.pattern.permute.xlu0 1
        %434 = vperm.xlu0 %433, %v303
        %v435 = vpop.permute.xlu0 %434
        %437 = vset.pattern.permute.xlu0 1
        %438 = vperm.xlu0 %437, %v304
        %v439 = vpop.permute.xlu0 %438
        %441 = vset.pattern.permute.xlu0 1
        %442 = vperm.xlu0 %441, %v305
        %v443 = vpop.permute.xlu0 %442
        %445 = vset.pattern.permute.xlu0 1
        %446 = vperm.xlu0 %445, %v306
        %v447 = vpop.permute.xlu0 %446
        %449 = vset.pattern.permute.xlu0 1
        %450 = vperm.xlu0 %449, %v307
        %v451 = vpop.permute.xlu0 %450
        %453 = vset.pattern.permute.xlu0 1
        %454 = vperm.xlu0 %453, %v308
        %v455 = vpop.permute.xlu0 %454
        %457 = vset.pattern.permute.xlu0 1
        %458 = vperm.xlu0 %457, %v309
        %v459 = vpop.permute.xlu0 %458
        %461 = vset.pattern.permute.xlu0 1
        %462 = vperm.xlu0 %461, %v310
        %v463 = vpop.permute.xlu0 %462
        %465 = vset.pattern.permute.xlu0 1
        %466 = vperm.xlu0 %465, %v311
        %v467 = vpop.permute.xlu0 %466
        %469 = vset.pattern.permute.xlu0 1
        %470 = vperm.xlu0 %469, %v312
        %v471 = vpop.permute.xlu0 %470
        %473 = vset.pattern.permute.xlu0 1
        %474 = vperm.xlu0 %473, %v313
        %v475 = vpop.permute.xlu0 %474
        %v477 = vperm.slane %v412, 0
        %v478 = vmul.f32 %v415, %v477
        %v479 = vmul.f32 %v419, %v477
        %v480 = vmul.f32 %v423, %v477
        %v481 = vmul.f32 %v427, %v477
        %v482 = vmul.f32 %v431, %v477
        %v483 = vmul.f32 %v435, %v477
        %v484 = vmul.f32 %v439, %v477
        %v485 = vmul.f32 %v443, %v477
        %v486 = vmul.f32 %v447, %v477
        %v487 = vmul.f32 %v451, %v477
        %v488 = vmul.f32 %v455, %v477
        %v489 = vmul.f32 %v459, %v477
        %v490 = vmul.f32 %v463, %v477
        %v491 = vmul.f32 %v467, %v477
        %v492 = vmul.f32 %v471, %v477
        %v493 = vmul.f32 %v475, %v477
        %v494 = vadd.f32 %v396, %v478
        %v495 = vadd.f32 %v397, %v479
        %v496 = vadd.f32 %v398, %v480
        %v497 = vadd.f32 %v399, %v481
        %v498 = vadd.f32 %v400, %v482
        %v499 = vadd.f32 %v401, %v483
        %v500 = vadd.f32 %v402, %v484
        %v501 = vadd.f32 %v403, %v485
        %v502 = vadd.f32 %v404, %v486
        %v503 = vadd.f32 %v405, %v487
        %v504 = vadd.f32 %v406, %v488
        %v505 = vadd.f32 %v407, %v489
        %v506 = vadd.f32 %v408, %v490
        %v507 = vadd.f32 %v409, %v491
        %v508 = vadd.f32 %v410, %v492
        %v509 = vadd.f32 %v411, %v493
        %511 = vset.pattern.permute.xlu0 0
        %512 = vperm.xlu0 %511, %v282
        %v513 = vpop.permute.xlu0 %512
        %516 = vset.pattern.permute.xlu0 0
        %517 = vperm.xlu0 %516, %v283
        %v518 = vpop.permute.xlu0 %517
        %521 = vset.pattern.permute.xlu0 0
        %522 = vperm.xlu0 %521, %v284
        %v523 = vpop.permute.xlu0 %522
        %526 = vset.pattern.permute.xlu0 0
        %527 = vperm.xlu0 %526, %v285
        %v528 = vpop.permute.xlu0 %527
        %531 = vset.pattern.permute.xlu0 0
        %532 = vperm.xlu0 %531, %v286
        %v533 = vpop.permute.xlu0 %532
        %536 = vset.pattern.permute.xlu0 0
        %537 = vperm.xlu0 %536, %v287
        %v538 = vpop.permute.xlu0 %537
        %541 = vset.pattern.permute.xlu0 0
        %542 = vperm.xlu0 %541, %v288
        %v543 = vpop.permute.xlu0 %542
        %546 = vset.pattern.permute.xlu0 0
        %547 = vperm.xlu0 %546, %v289
        %v548 = vpop.permute.xlu0 %547
        %551 = vset.pattern.permute.xlu0 0
        %552 = vperm.xlu0 %551, %v290
        %v553 = vpop.permute.xlu0 %552
        %556 = vset.pattern.permute.xlu0 0
        %557 = vperm.xlu0 %556, %v291
        %v558 = vpop.permute.xlu0 %557
        %561 = vset.pattern.permute.xlu0 0
        %562 = vperm.xlu0 %561, %v292
        %v563 = vpop.permute.xlu0 %562
        %566 = vset.pattern.permute.xlu0 0
        %567 = vperm.xlu0 %566, %v293
        %v568 = vpop.permute.xlu0 %567
        %571 = vset.pattern.permute.xlu0 0
        %572 = vperm.xlu0 %571, %v294
        %v573 = vpop.permute.xlu0 %572
        %576 = vset.pattern.permute.xlu0 0
        %577 = vperm.xlu0 %576, %v295
        %v578 = vpop.permute.xlu0 %577
        %581 = vset.pattern.permute.xlu0 0
        %582 = vperm.xlu0 %581, %v296
        %v583 = vpop.permute.xlu0 %582
        %586 = vset.pattern.permute.xlu0 0
        %587 = vperm.xlu0 %586, %v297
        %v588 = vpop.permute.xlu0 %587
        %v590 = vadd.f32 %v494, %v513
        %v591 = vadd.f32 %v495, %v518
        %v592 = vadd.f32 %v496, %v523
        %v593 = vadd.f32 %v497, %v528
        %v594 = vadd.f32 %v498, %v533
        %v595 = vadd.f32 %v499, %v538
        %v596 = vadd.f32 %v500, %v543
        %v597 = vadd.f32 %v501, %v548
        %v598 = vadd.f32 %v502, %v553
        %v599 = vadd.f32 %v503, %v558
        %v600 = vadd.f32 %v504, %v563
        %v601 = vadd.f32 %v505, %v568
        %v602 = vadd.f32 %v506, %v573
        %v603 = vadd.f32 %v507, %v578
        %v604 = vadd.f32 %v508, %v583
        %v605 = vadd.f32 %v509, %v588
        %v606 = vtanh.pop %v590
        %v607 = vtanh.pop %v591
        %v608 = vtanh.pop %v592
        %v609 = vtanh.pop %v593
        %v610 = vtanh.pop %v594
        %v611 = vtanh.pop %v595
        %v612 = vtanh.pop %v596
        %v613 = vtanh.pop %v597
        %v614 = vtanh.pop %v598
        %v615 = vtanh.pop %v599
        %v616 = vtanh.pop %v600
        %v617 = vtanh.pop %v601
        %v618 = vtanh.pop %v602
        %v619 = vtanh.pop %v603
        %v620 = vtanh.pop %v604
        %v621 = vtanh.pop %v605
        %622 = vst [vmem:[#allocation2] sm:$0xff] %v606
        %623 = vst [vmem:[#allocation2 + $0x20] sm:$0xff] %v607
        %624 = vst [vmem:[#allocation2 + $0x40] sm:$0xff] %v608
        %625 = vst [vmem:[#allocation2 + $0x60] sm:$0xff] %v609
        %626 = vst [vmem:[#allocation2 + $0x80] sm:$0xff] %v610
        %627 = vst [vmem:[#allocation2 + $0xa0] sm:$0xff] %v611
        %628 = vst [vmem:[#allocation2 + $0xc0] sm:$0xff] %v612
        %629 = vst [vmem:[#allocation2 + $0xe0] sm:$0xff] %v613
        %630 = vst [vmem:[#allocation2 + $0x100] sm:$0xff] %v614
        %631 = vst [vmem:[#allocation2 + $0x120] sm:$0xff] %v615
        %632 = vst [vmem:[#allocation2 + $0x140] sm:$0xff] %v616
        %633 = vst [vmem:[#allocation2 + $0x160] sm:$0xff] %v617
        %634 = vst [vmem:[#allocation2 + $0x180] sm:$0xff] %v618
        %635 = vst [vmem:[#allocation2 + $0x1a0] sm:$0xff] %v619
        %636 = vst [vmem:[#allocation2 + $0x1c0] sm:$0xff] %v620
        %637 = vst [vmem:[#allocation2 + $0x1e0] sm:$0xff] %v621
        %v638 = vld [vmem:[%s279 + $0x2] sm:$0x1]
        %v639 = vperm.slane %v638, 0
        %v640 = vmul.f32 %v318, %v639
        %v641 = vmul.f32 %v323, %v639
        %v642 = vmul.f32 %v328, %v639
        %v643 = vmul.f32 %v333, %v639
        %v644 = vmul.f32 %v338, %v639
        %v645 = vmul.f32 %v343, %v639
        %v646 = vmul.f32 %v348, %v639
        %v647 = vmul.f32 %v353, %v639
        %v648 = vmul.f32 %v358, %v639
        %v649 = vmul.f32 %v363, %v639
        %v650 = vmul.f32 %v368, %v639
        %v651 = vmul.f32 %v373, %v639
        %v652 = vmul.f32 %v378, %v639
        %v653 = vmul.f32 %v383, %v639
        %v654 = vmul.f32 %v388, %v639
        %v655 = vmul.f32 %v393, %v639
        %v656 = vld [vmem:[%s279 + $0x3] sm:$0x1]
        %v657 = vperm.slane %v656, 0
        %v658 = vmul.f32 %v415, %v657
        %v659 = vmul.f32 %v419, %v657
        %v660 = vmul.f32 %v423, %v657
        %v661 = vmul.f32 %v427, %v657
        %v662 = vmul.f32 %v431, %v657
        %v663 = vmul.f32 %v435, %v657
        %v664 = vmul.f32 %v439, %v657
        %v665 = vmul.f32 %v443, %v657
        %v666 = vmul.f32 %v447, %v657
        %v667 = vmul.f32 %v451, %v657
        %v668 = vmul.f32 %v455, %v657
        %v669 = vmul.f32 %v459, %v657
        %v670 = vmul.f32 %v463, %v657
        %v671 = vmul.f32 %v467, %v657
        %v672 = vmul.f32 %v471, %v657
        %v673 = vmul.f32 %v475, %v657
        %v674 = vadd.f32 %v640, %v658
        %v675 = vadd.f32 %v641, %v659
        %v676 = vadd.f32 %v642, %v660
        %v677 = vadd.f32 %v643, %v661
        %v678 = vadd.f32 %v644, %v662
        %v679 = vadd.f32 %v645, %v663
        %v680 = vadd.f32 %v646, %v664
        %v681 = vadd.f32 %v647, %v665
        %v682 = vadd.f32 %v648, %v666
        %v683 = vadd.f32 %v649, %v667
        %v684 = vadd.f32 %v650, %v668
        %v685 = vadd.f32 %v651, %v669
        %v686 = vadd.f32 %v652, %v670
        %v687 = vadd.f32 %v653, %v671
        %v688 = vadd.f32 %v654, %v672
        %v689 = vadd.f32 %v655, %v673
        %v690 = vadd.f32 %v674, %v513
        %v691 = vadd.f32 %v675, %v518
        %v692 = vadd.f32 %v676, %v523
        %v693 = vadd.f32 %v677, %v528
        %v694 = vadd.f32 %v678, %v533
        %v695 = vadd.f32 %v679, %v538
        %v696 = vadd.f32 %v680, %v543
        %v697 = vadd.f32 %v681, %v548
        %v698 = vadd.f32 %v682, %v553
        %v699 = vadd.f32 %v683, %v558
        %v700 = vadd.f32 %v684, %v563
        %v701 = vadd.f32 %v685, %v568
        %v702 = vadd.f32 %v686, %v573
        %v703 = vadd.f32 %v687, %v578
        %v704 = vadd.f32 %v688, %v583
        %v705 = vadd.f32 %v689, %v588
        %v706 = vtanh.pop %v690
        %v707 = vtanh.pop %v691
        %v708 = vtanh.pop %v692
        %v709 = vtanh.pop %v693
        %v710 = vtanh.pop %v694
        %v711 = vtanh.pop %v695
        %v712 = vtanh.pop %v696
        %v713 = vtanh.pop %v697
        %v714 = vtanh.pop %v698
        %v715 = vtanh.pop %v699
        %v716 = vtanh.pop %v700
        %v717 = vtanh.pop %v701
        %v718 = vtanh.pop %v702
        %v719 = vtanh.pop %v703
        %v720 = vtanh.pop %v704
        %v721 = vtanh.pop %v705
        %722 = vst [vmem:[#allocation2 + $0x8] sm:$0xff] %v706
        %723 = vst [vmem:[#allocation2 + $0x28] sm:$0xff] %v707
        %724 = vst [vmem:[#allocation2 + $0x48] sm:$0xff] %v708
        %725 = vst [vmem:[#allocation2 + $0x68] sm:$0xff] %v709
        %726 = vst [vmem:[#allocation2 + $0x88] sm:$0xff] %v710
        %727 = vst [vmem:[#allocation2 + $0xa8] sm:$0xff] %v711
        %728 = vst [vmem:[#allocation2 + $0xc8] sm:$0xff] %v712
        %729 = vst [vmem:[#allocation2 + $0xe8] sm:$0xff] %v713
        %730 = vst [vmem:[#allocation2 + $0x108] sm:$0xff] %v714
        %731 = vst [vmem:[#allocation2 + $0x128] sm:$0xff] %v715
        %732 = vst [vmem:[#allocation2 + $0x148] sm:$0xff] %v716
        %733 = vst [vmem:[#allocation2 + $0x168] sm:$0xff] %v717
        %734 = vst [vmem:[#allocation2 + $0x188] sm:$0xff] %v718
        %735 = vst [vmem:[#allocation2 + $0x1a8] sm:$0xff] %v719
        %736 = vst [vmem:[#allocation2 + $0x1c8] sm:$0xff] %v720
        %737 = vst [vmem:[#allocation2 + $0x1e8] sm:$0xff] %v721
        %v738 = vld [vmem:[%s279 + $0x4] sm:$0x1]
        %v739 = vperm.slane %v738, 0
        %v740 = vmul.f32 %v318, %v739
        %v741 = vmul.f32 %v323, %v739
        %v742 = vmul.f32 %v328, %v739
        %v743 = vmul.f32 %v333, %v739
        %v744 = vmul.f32 %v338, %v739
        %v745 = vmul.f32 %v343, %v739
        %v746 = vmul.f32 %v348, %v739
        %v747 = vmul.f32 %v353, %v739
        %v748 = vmul.f32 %v358, %v739
        %v749 = vmul.f32 %v363, %v739
        %v750 = vmul.f32 %v368, %v739
        %v751 = vmul.f32 %v373, %v739
        %v752 = vmul.f32 %v378, %v739
        %v753 = vmul.f32 %v383, %v739
        %v754 = vmul.f32 %v388, %v739
        %v755 = vmul.f32 %v393, %v739
        %v756 = vld [vmem:[%s279 + $0x5] sm:$0x1]
        %v757 = vperm.slane %v756, 0
        %v758 = vmul.f32 %v415, %v757
        %v759 = vmul.f32 %v419, %v757
        %v760 = vmul.f32 %v423, %v757
        %v761 = vmul.f32 %v427, %v757
        %v762 = vmul.f32 %v431, %v757
        %v763 = vmul.f32 %v435, %v757
        %v764 = vmul.f32 %v439, %v757
        %v765 = vmul.f32 %v443, %v757
        %v766 = vmul.f32 %v447, %v757
        %v767 = vmul.f32 %v451, %v757
        %v768 = vmul.f32 %v455, %v757
        %v769 = vmul.f32 %v459, %v757
        %v770 = vmul.f32 %v463, %v757
        %v771 = vmul.f32 %v467, %v757
        %v772 = vmul.f32 %v471, %v757
        %v773 = vmul.f32 %v475, %v757
        %v774 = vadd.f32 %v740, %v758
        %v775 = vadd.f32 %v741, %v759
        %v776 = vadd.f32 %v742, %v760
        %v777 = vadd.f32 %v743, %v761
        %v778 = vadd.f32 %v744, %v762
        %v779 = vadd.f32 %v745, %v763
        %v780 = vadd.f32 %v746, %v764
        %v781 = vadd.f32 %v747, %v765
        %v782 = vadd.f32 %v748, %v766
        %v783 = vadd.f32 %v749, %v767
        %v784 = vadd.f32 %v750, %v768
        %v785 = vadd.f32 %v751, %v769
        %v786 = vadd.f32 %v752, %v770
        %v787 = vadd.f32 %v753, %v771
        %v788 = vadd.f32 %v754, %v772
        %v789 = vadd.f32 %v755, %v773
        %v790 = vadd.f32 %v774, %v513
        %v791 = vadd.f32 %v775, %v518
        %v792 = vadd.f32 %v776, %v523
        %v793 = vadd.f32 %v777, %v528
        %v794 = vadd.f32 %v778, %v533
        %v795 = vadd.f32 %v779, %v538
        %v796 = vadd.f32 %v780, %v543
        %v797 = vadd.f32 %v781, %v548
        %v798 = vadd.f32 %v782, %v553
        %v799 = vadd.f32 %v783, %v558
        %v800 = vadd.f32 %v784, %v563
        %v801 = vadd.f32 %v785, %v568
        %v802 = vadd.f32 %v786, %v573
        %v803 = vadd.f32 %v787, %v578
        %v804 = vadd.f32 %v788, %v583
        %v805 = vadd.f32 %v789, %v588
        %v806 = vtanh.pop %v790
        %v807 = vtanh.pop %v791
        %v808 = vtanh.pop %v792
        %v809 = vtanh.pop %v793
        %v810 = vtanh.pop %v794
        %v811 = vtanh.pop %v795
        %v812 = vtanh.pop %v796
        %v813 = vtanh.pop %v797
        %v814 = vtanh.pop %v798
        %v815 = vtanh.pop %v799
        %v816 = vtanh.pop %v800
        %v817 = vtanh.pop %v801
        %v818 = vtanh.pop %v802
        %v819 = vtanh.pop %v803
        %v820 = vtanh.pop %v804
        %v821 = vtanh.pop %v805
        %822 = vst [vmem:[#allocation2 + $0x10] sm:$0xff] %v806
        %823 = vst [vmem:[#allocation2 + $0x30] sm:$0xff] %v807
        %824 = vst [vmem:[#allocation2 + $0x50] sm:$0xff] %v808
        %825 = vst [vmem:[#allocation2 + $0x70] sm:$0xff] %v809
        %826 = vst [vmem:[#allocation2 + $0x90] sm:$0xff] %v810
        %827 = vst [vmem:[#allocation2 + $0xb0] sm:$0xff] %v811
        %828 = vst [vmem:[#allocation2 + $0xd0] sm:$0xff] %v812
        %829 = vst [vmem:[#allocation2 + $0xf0] sm:$0xff] %v813
        %830 = vst [vmem:[#allocation2 + $0x110] sm:$0xff] %v814
        %831 = vst [vmem:[#allocation2 + $0x130] sm:$0xff] %v815
        %832 = vst [vmem:[#allocation2 + $0x150] sm:$0xff] %v816
        %833 = vst [vmem:[#allocation2 + $0x170] sm:$0xff] %v817
        %834 = vst [vmem:[#allocation2 + $0x190] sm:$0xff] %v818
        %835 = vst [vmem:[#allocation2 + $0x1b0] sm:$0xff] %v819
        %836 = vst [vmem:[#allocation2 + $0x1d0] sm:$0xff] %v820
        %837 = vst [vmem:[#allocation2 + $0x1f0] sm:$0xff] %v821
        %v838 = vld [vmem:[%s279 + $0x6] sm:$0x1]
        %v839 = vperm.slane %v838, 0
        %v840 = vmul.f32 %v318, %v839
        %v841 = vmul.f32 %v323, %v839
        %v842 = vmul.f32 %v328, %v839
        %v843 = vmul.f32 %v333, %v839
        %v844 = vmul.f32 %v338, %v839
        %v845 = vmul.f32 %v343, %v839
        %v846 = vmul.f32 %v348, %v839
        %v847 = vmul.f32 %v353, %v839
        %v848 = vmul.f32 %v358, %v839
        %v849 = vmul.f32 %v363, %v839
        %v850 = vmul.f32 %v368, %v839
        %v851 = vmul.f32 %v373, %v839
        %v852 = vmul.f32 %v378, %v839
        %v853 = vmul.f32 %v383, %v839
        %v854 = vmul.f32 %v388, %v839
        %v855 = vmul.f32 %v393, %v839
        %v856 = vld [vmem:[%s279 + $0x7] sm:$0x1]
        %v857 = vperm.slane %v856, 0
        %v858 = vmul.f32 %v415, %v857
        %v859 = vmul.f32 %v419, %v857
        %v860 = vmul.f32 %v423, %v857
        %v861 = vmul.f32 %v427, %v857
        %v862 = vmul.f32 %v431, %v857
        %v863 = vmul.f32 %v435, %v857
        %v864 = vmul.f32 %v439, %v857
        %v865 = vmul.f32 %v443, %v857
        %v866 = vmul.f32 %v447, %v857
        %v867 = vmul.f32 %v451, %v857
        %v868 = vmul.f32 %v455, %v857
        %v869 = vmul.f32 %v459, %v857
        %v870 = vmul.f32 %v463, %v857
        %v871 = vmul.f32 %v467, %v857
        %v872 = vmul.f32 %v471, %v857
        %v873 = vmul.f32 %v475, %v857
        %v874 = vadd.f32 %v840, %v858
        %v875 = vadd.f32 %v841, %v859
        %v876 = vadd.f32 %v842, %v860
        %v877 = vadd.f32 %v843, %v861
        %v878 = vadd.f32 %v844, %v862
        %v879 = vadd.f32 %v845, %v863
        %v880 = vadd.f32 %v846, %v864
        %v881 = vadd.f32 %v847, %v865
        %v882 = vadd.f32 %v848, %v866
        %v883 = vadd.f32 %v849, %v867
        %v884 = vadd.f32 %v850, %v868
        %v885 = vadd.f32 %v851, %v869
        %v886 = vadd.f32 %v852, %v870
        %v887 = vadd.f32 %v853, %v871
        %v888 = vadd.f32 %v854, %v872
        %v889 = vadd.f32 %v855, %v873
        %v890 = vadd.f32 %v874, %v513
        %v891 = vadd.f32 %v875, %v518
        %v892 = vadd.f32 %v876, %v523
        %v893 = vadd.f32 %v877, %v528
        %v894 = vadd.f32 %v878, %v533
        %v895 = vadd.f32 %v879, %v538
        %v896 = vadd.f32 %v880, %v543
        %v897 = vadd.f32 %v881, %v548
        %v898 = vadd.f32 %v882, %v553
        %v899 = vadd.f32 %v883, %v558
        %v900 = vadd.f32 %v884, %v563
        %v901 = vadd.f32 %v885, %v568
        %v902 = vadd.f32 %v886, %v573
        %v903 = vadd.f32 %v887, %v578
        %v904 = vadd.f32 %v888, %v583
        %v905 = vadd.f32 %v889, %v588
        %v906 = vtanh.pop %v890
        %v907 = vtanh.pop %v891
        %v908 = vtanh.pop %v892
        %v909 = vtanh.pop %v893
        %v910 = vtanh.pop %v894
        %v911 = vtanh.pop %v895
        %v912 = vtanh.pop %v896
        %v913 = vtanh.pop %v897
        %v914 = vtanh.pop %v898
        %v915 = vtanh.pop %v899
        %v916 = vtanh.pop %v900
        %v917 = vtanh.pop %v901
        %v918 = vtanh.pop %v902
        %v919 = vtanh.pop %v903
        %v920 = vtanh.pop %v904
        %v921 = vtanh.pop %v905
        %922 = vst [vmem:[#allocation2 + $0x18] sm:$0xff] %v906
        %923 = vst [vmem:[#allocation2 + $0x38] sm:$0xff] %v907
        %924 = vst [vmem:[#allocation2 + $0x58] sm:$0xff] %v908
        %925 = vst [vmem:[#allocation2 + $0x78] sm:$0xff] %v909
        %926 = vst [vmem:[#allocation2 + $0x98] sm:$0xff] %v910
        %927 = vst [vmem:[#allocation2 + $0xb8] sm:$0xff] %v911
        %928 = vst [vmem:[#allocation2 + $0xd8] sm:$0xff] %v912
        %929 = vst [vmem:[#allocation2 + $0xf8] sm:$0xff] %v913
        %930 = vst [vmem:[#allocation2 + $0x118] sm:$0xff] %v914
        %931 = vst [vmem:[#allocation2 + $0x138] sm:$0xff] %v915
        %932 = vst [vmem:[#allocation2 + $0x158] sm:$0xff] %v916
        %933 = vst [vmem:[#allocation2 + $0x178] sm:$0xff] %v917
        %934 = vst [vmem:[#allocation2 + $0x198] sm:$0xff] %v918
        %935 = vst [vmem:[#allocation2 + $0x1b8] sm:$0xff] %v919
        %936 = vst [vmem:[#allocation2 + $0x1d8] sm:$0xff] %v920
        %937 = vst [vmem:[#allocation2 + $0x1f8] sm:$0xff] %v921
        %v938 = vld [vmem:[%s3] sm:$0xff]
        %v939 = vld [vmem:[%s3 + $0x8] sm:$0xff]
        %v940 = vld [vmem:[%s3 + $0x10] sm:$0xff]
        %v941 = vld [vmem:[%s3 + $0x18] sm:$0xff]
        %v942 = vld [vmem:[%s3 + $0x20] sm:$0xff]
        %v943 = vld [vmem:[%s3 + $0x28] sm:$0xff]
        %v944 = vld [vmem:[%s3 + $0x30] sm:$0xff]
        %v945 = vld [vmem:[%s3 + $0x38] sm:$0xff]
        %v946 = vld [vmem:[%s3 + $0x40] sm:$0xff]
        %v947 = vld [vmem:[%s3 + $0x48] sm:$0xff]
        %v948 = vld [vmem:[%s3 + $0x50] sm:$0xff]
        %v949 = vld [vmem:[%s3 + $0x58] sm:$0xff]
        %v950 = vld [vmem:[%s3 + $0x60] sm:$0xff]
        %v951 = vld [vmem:[%s3 + $0x68] sm:$0xff]
        %v952 = vld [vmem:[%s3 + $0x70] sm:$0xff]
        %v953 = vld [vmem:[%s3 + $0x78] sm:$0xff]
        %v954 = vld [vmem:[%s4] sm:$0xff]
        %v955 = vld [vmem:[%s4 + $0x8] sm:$0xff]
        %v956 = vld [vmem:[%s4 + $0x10] sm:$0xff]
        %v957 = vld [vmem:[%s4 + $0x18] sm:$0xff]
        %v958 = vld [vmem:[%s4 + $0x20] sm:$0xff]
        %v959 = vld [vmem:[%s4 + $0x28] sm:$0xff]
        %v960 = vld [vmem:[%s4 + $0x30] sm:$0xff]
        %v961 = vld [vmem:[%s4 + $0x38] sm:$0xff]
        %v962 = vld [vmem:[%s4 + $0x40] sm:$0xff]
        %v963 = vld [vmem:[%s4 + $0x48] sm:$0xff]
        %v964 = vld [vmem:[%s4 + $0x50] sm:$0xff]
        %v965 = vld [vmem:[%s4 + $0x58] sm:$0xff]
        %v966 = vld [vmem:[%s4 + $0x60] sm:$0xff]
        %v967 = vld [vmem:[%s4 + $0x68] sm:$0xff]
        %v968 = vld [vmem:[%s4 + $0x70] sm:$0xff]
        %v969 = vld [vmem:[%s4 + $0x78] sm:$0xff]
        %v970 = vld [vmem:[#allocation2] sm:$0xff]
        %v971 = vld [vmem:[#allocation2 + $0x20] sm:$0xff]
        %v972 = vld [vmem:[#allocation2 + $0x40] sm:$0xff]
        %v973 = vld [vmem:[#allocation2 + $0x60] sm:$0xff]
        %v974 = vld [vmem:[#allocation2 + $0x80] sm:$0xff]
        %v975 = vld [vmem:[#allocation2 + $0xa0] sm:$0xff]
        %v976 = vld [vmem:[#allocation2 + $0xc0] sm:$0xff]
        %v977 = vld [vmem:[#allocation2 + $0xe0] sm:$0xff]
        %v978 = vld [vmem:[#allocation2 + $0x100] sm:$0xff]
        %v979 = vld [vmem:[#allocation2 + $0x120] sm:$0xff]
        %v980 = vld [vmem:[#allocation2 + $0x140] sm:$0xff]
        %v981 = vld [vmem:[#allocation2 + $0x160] sm:$0xff]
        %v982 = vld [vmem:[#allocation2 + $0x180] sm:$0xff]
        %v983 = vld [vmem:[#allocation2 + $0x1a0] sm:$0xff]
        %v984 = vld [vmem:[#allocation2 + $0x1c0] sm:$0xff]
        %v985 = vld [vmem:[#allocation2 + $0x1e0] sm:$0xff]
        %987 = vset.pattern.permute.xlu0 0
        %988 = vperm.xlu0 %987, %v954
        %v989 = vpop.permute.xlu0 %988
        %992 = vset.pattern.permute.xlu0 0
        %993 = vperm.xlu0 %992, %v955
        %v994 = vpop.permute.xlu0 %993
        %997 = vset.pattern.permute.xlu0 0
        %998 = vperm.xlu0 %997, %v956
        %v999 = vpop.permute.xlu0 %998
        %1002 = vset.pattern.permute.xlu0 0
        %1003 = vperm.xlu0 %1002, %v957
        %v1004 = vpop.permute.xlu0 %1003
        %1007 = vset.pattern.permute.xlu0 0
        %1008 = vperm.xlu0 %1007, %v958
        %v1009 = vpop.permute.xlu0 %1008
        %1012 = vset.pattern.permute.xlu0 0
        %1013 = vperm.xlu0 %1012, %v959
        %v1014 = vpop.permute.xlu0 %1013
        %1017 = vset.pattern.permute.xlu0 0
        %1018 = vperm.xlu0 %1017, %v960
        %v1019 = vpop.permute.xlu0 %1018
        %1022 = vset.pattern.permute.xlu0 0
        %1023 = vperm.xlu0 %1022, %v961
        %v1024 = vpop.permute.xlu0 %1023
        %1027 = vset.pattern.permute.xlu0 0
        %1028 = vperm.xlu0 %1027, %v962
        %v1029 = vpop.permute.xlu0 %1028
        %1032 = vset.pattern.permute.xlu0 0
        %1033 = vperm.xlu0 %1032, %v963
        %v1034 = vpop.permute.xlu0 %1033
        %1037 = vset.pattern.permute.xlu0 0
        %1038 = vperm.xlu0 %1037, %v964
        %v1039 = vpop.permute.xlu0 %1038
        %1042 = vset.pattern.permute.xlu0 0
        %1043 = vperm.xlu0 %1042, %v965
        %v1044 = vpop.permute.xlu0 %1043
        %1047 = vset.pattern.permute.xlu0 0
        %1048 = vperm.xlu0 %1047, %v966
        %v1049 = vpop.permute.xlu0 %1048
        %1052 = vset.pattern.permute.xlu0 0
        %1053 = vperm.xlu0 %1052, %v967
        %v1054 = vpop.permute.xlu0 %1053
        %1057 = vset.pattern.permute.xlu0 0
        %1058 = vperm.xlu0 %1057, %v968
        %v1059 = vpop.permute.xlu0 %1058
        %1062 = vset.pattern.permute.xlu0 0
        %1063 = vperm.xlu0 %1062, %v969
        %v1064 = vpop.permute.xlu0 %1063
        %1066 = vmatpush.msra.mxu0 %v985
        %1067 = vmatpush.msra.mxu0 %v984
        %1068 = vmatpush.msra.mxu0 %v983
        %1069 = vmatpush.msra.mxu0 %v982
        %1070 = vmatpush.msra.mxu0 %v981
        %1071 = vmatpush.msra.mxu0 %v980
        %1072 = vmatpush.msra.mxu0 %v979
        %1073 = vmatpush.msra.mxu0 %v978
        %1074 = vmatpush.msra.mxu0 %v977
        %1075 = vmatpush.msra.mxu0 %v976
        %1076 = vmatpush.msra.mxu0 %v975
        %1077 = vmatpush.msra.mxu0 %v974
        %1078 = vmatpush.msra.mxu0 %v973
        %1079 = vmatpush.msra.mxu0 %v972
        %1080 = vmatpush.msra.mxu0 %v971
        %1081 = vmatpush.msra.mxu0 %v970
        %1082 = vmatmul.f32.gmra.mxu0 %v938
        %v1083 = vpop.f32.mrf.mxu0
        %v1084 = vadd.f32 %v989, %v1083
        %1085 = vmatmul.f32.gmra.mxu0 %v939
        %v1086 = vpop.f32.mrf.mxu0
        %v1087 = vadd.f32 %v994, %v1086
        %1088 = vmatmul.f32.gmra.mxu0 %v940
        %v1089 = vpop.f32.mrf.mxu0
        %v1090 = vadd.f32 %v999, %v1089
        %1091 = vmatmul.f32.gmra.mxu0 %v941
        %v1092 = vpop.f32.mrf.mxu0
        %v1093 = vadd.f32 %v1004, %v1092
        %1094 = vmatmul.f32.gmra.mxu0 %v942
        %v1095 = vpop.f32.mrf.mxu0
        %v1096 = vadd.f32 %v1009, %v1095
        %1097 = vmatmul.f32.gmra.mxu0 %v943
        %v1098 = vpop.f32.mrf.mxu0
        %v1099 = vadd.f32 %v1014, %v1098
        %1100 = vmatmul.f32.gmra.mxu0 %v944
        %v1101 = vpop.f32.mrf.mxu0
        %v1102 = vadd.f32 %v1019, %v1101
        %1103 = vmatmul.f32.gmra.mxu0 %v945
        %v1104 = vpop.f32.mrf.mxu0
        %v1105 = vadd.f32 %v1024, %v1104
        %1106 = vmatmul.f32.gmra.mxu0 %v946
        %v1107 = vpop.f32.mrf.mxu0
        %v1108 = vadd.f32 %v1029, %v1107
        %1109 = vmatmul.f32.gmra.mxu0 %v947
        %v1110 = vpop.f32.mrf.mxu0
        %v1111 = vadd.f32 %v1034, %v1110
        %1112 = vmatmul.f32.gmra.mxu0 %v948
        %v1113 = vpop.f32.mrf.mxu0
        %v1114 = vadd.f32 %v1039, %v1113
        %1115 = vmatmul.f32.gmra.mxu0 %v949
        %v1116 = vpop.f32.mrf.mxu0
        %v1117 = vadd.f32 %v1044, %v1116
        %1118 = vmatmul.f32.gmra.mxu0 %v950
        %v1119 = vpop.f32.mrf.mxu0
        %v1120 = vadd.f32 %v1049, %v1119
        %1121 = vmatmul.f32.gmra.mxu0 %v951
        %v1122 = vpop.f32.mrf.mxu0
        %v1123 = vadd.f32 %v1054, %v1122
        %1124 = vmatmul.f32.gmra.mxu0 %v952
        %v1125 = vpop.f32.mrf.mxu0
        %v1126 = vadd.f32 %v1059, %v1125
        %1127 = vmatmul.f32.gmra.mxu0 %v953
        %v1128 = vpop.f32.mrf.mxu0
        %v1129 = vadd.f32 %v1064, %v1128
        %1130 = vdwg.mxu0
        %v1131 = vtanh.pop %v1084
        %v1132 = vtanh.pop %v1087
        %v1133 = vtanh.pop %v1090
        %v1134 = vtanh.pop %v1093
        %v1135 = vtanh.pop %v1096
        %v1136 = vtanh.pop %v1099
        %v1137 = vtanh.pop %v1102
        %v1138 = vtanh.pop %v1105
        %v1139 = vtanh.pop %v1108
        %v1140 = vtanh.pop %v1111
        %v1141 = vtanh.pop %v1114
        %v1142 = vtanh.pop %v1117
        %v1143 = vtanh.pop %v1120
        %v1144 = vtanh.pop %v1123
        %v1145 = vtanh.pop %v1126
        %v1146 = vtanh.pop %v1129
        %1147 = vst [vmem:[#allocation3] sm:$0xff] %v1131
        %1148 = vst [vmem:[#allocation3 + $0x20] sm:$0xff] %v1132
        %1149 = vst [vmem:[#allocation3 + $0x40] sm:$0xff] %v1133
        %1150 = vst [vmem:[#allocation3 + $0x60] sm:$0xff] %v1134
        %1151 = vst [vmem:[#allocation3 + $0x80] sm:$0xff] %v1135
        %1152 = vst [vmem:[#allocation3 + $0xa0] sm:$0xff] %v1136
        %1153 = vst [vmem:[#allocation3 + $0xc0] sm:$0xff] %v1137
        %1154 = vst [vmem:[#allocation3 + $0xe0] sm:$0xff] %v1138
        %1155 = vst [vmem:[#allocation3 + $0x100] sm:$0xff] %v1139
        %1156 = vst [vmem:[#allocation3 + $0x120] sm:$0xff] %v1140
        %1157 = vst [vmem:[#allocation3 + $0x140] sm:$0xff] %v1141
        %1158 = vst [vmem:[#allocation3 + $0x160] sm:$0xff] %v1142
        %1159 = vst [vmem:[#allocation3 + $0x180] sm:$0xff] %v1143
        %1160 = vst [vmem:[#allocation3 + $0x1a0] sm:$0xff] %v1144
        %1161 = vst [vmem:[#allocation3 + $0x1c0] sm:$0xff] %v1145
        %1162 = vst [vmem:[#allocation3 + $0x1e0] sm:$0xff] %v1146
        %v1163 = vld [vmem:[#allocation2 + $0x8] sm:$0xff]
        %v1164 = vld [vmem:[#allocation2 + $0x28] sm:$0xff]
        %v1165 = vld [vmem:[#allocation2 + $0x48] sm:$0xff]
        %v1166 = vld [vmem:[#allocation2 + $0x68] sm:$0xff]
        %v1167 = vld [vmem:[#allocation2 + $0x88] sm:$0xff]
        %v1168 = vld [vmem:[#allocation2 + $0xa8] sm:$0xff]
        %v1169 = vld [vmem:[#allocation2 + $0xc8] sm:$0xff]
        %v1170 = vld [vmem:[#allocation2 + $0xe8] sm:$0xff]
        %v1171 = vld [vmem:[#allocation2 + $0x108] sm:$0xff]
        %v1172 = vld [vmem:[#allocation2 + $0x128] sm:$0xff]
        %v1173 = vld [vmem:[#allocation2 + $0x148] sm:$0xff]
        %v1174 = vld [vmem:[#allocation2 + $0x168] sm:$0xff]
        %v1175 = vld [vmem:[#allocation2 + $0x188] sm:$0xff]
        %v1176 = vld [vmem:[#allocation2 + $0x1a8] sm:$0xff]
        %v1177 = vld [vmem:[#allocation2 + $0x1c8] sm:$0xff]
        %v1178 = vld [vmem:[#allocation2 + $0x1e8] sm:$0xff]
        %1179 = vmatpush.msra.mxu0 %v1178
        %1180 = vmatpush.msra.mxu0 %v1177
        %1181 = vmatpush.msra.mxu0 %v1176
        %1182 = vmatpush.msra.mxu0 %v1175
        %1183 = vmatpush.msra.mxu0 %v1174
        %1184 = vmatpush.msra.mxu0 %v1173
        %1185 = vmatpush.msra.mxu0 %v1172
        %1186 = vmatpush.msra.mxu0 %v1171
        %1187 = vmatpush.msra.mxu0 %v1170
        %1188 = vmatpush.msra.mxu0 %v1169
        %1189 = vmatpush.msra.mxu0 %v1168
        %1190 = vmatpush.msra.mxu0 %v1167
        %1191 = vmatpush.msra.mxu0 %v1166
        %1192 = vmatpush.msra.mxu0 %v1165
        %1193 = vmatpush.msra.mxu0 %v1164
        %1194 = vmatpush.msra.mxu0 %v1163
        %1195 = vmatmul.f32.gmra.mxu0 %v938
        %v1196 = vpop.f32.mrf.mxu0
        %v1197 = vadd.f32 %v989, %v1196
        %1198 = vmatmul.f32.gmra.mxu0 %v939
        %v1199 = vpop.f32.mrf.mxu0
        %v1200 = vadd.f32 %v994, %v1199
        %1201 = vmatmul.f32.gmra.mxu0 %v940
        %v1202 = vpop.f32.mrf.mxu0
        %v1203 = vadd.f32 %v999, %v1202
        %1204 = vmatmul.f32.gmra.mxu0 %v941
        %v1205 = vpop.f32.mrf.mxu0
        %v1206 = vadd.f32 %v1004, %v1205
        %1207 = vmatmul.f32.gmra.mxu0 %v942
        %v1208 = vpop.f32.mrf.mxu0
        %v1209 = vadd.f32 %v1009, %v1208
        %1210 = vmatmul.f32.gmra.mxu0 %v943
        %v1211 = vpop.f32.mrf.mxu0
        %v1212 = vadd.f32 %v1014, %v1211
        %1213 = vmatmul.f32.gmra.mxu0 %v944
        %v1214 = vpop.f32.mrf.mxu0
        %v1215 = vadd.f32 %v1019, %v1214
        %1216 = vmatmul.f32.gmra.mxu0 %v945
        %v1217 = vpop.f32.mrf.mxu0
        %v1218 = vadd.f32 %v1024, %v1217
        %1219 = vmatmul.f32.gmra.mxu0 %v946
        %v1220 = vpop.f32.mrf.mxu0
        %v1221 = vadd.f32 %v1029, %v1220
        %1222 = vmatmul.f32.gmra.mxu0 %v947
        %v1223 = vpop.f32.mrf.mxu0
        %v1224 = vadd.f32 %v1034, %v1223
        %1225 = vmatmul.f32.gmra.mxu0 %v948
        %v1226 = vpop.f32.mrf.mxu0
        %v1227 = vadd.f32 %v1039, %v1226
        %1228 = vmatmul.f32.gmra.mxu0 %v949
        %v1229 = vpop.f32.mrf.mxu0
        %v1230 = vadd.f32 %v1044, %v1229
        %1231 = vmatmul.f32.gmra.mxu0 %v950
        %v1232 = vpop.f32.mrf.mxu0
        %v1233 = vadd.f32 %v1049, %v1232
        %1234 = vmatmul.f32.gmra.mxu0 %v951
        %v1235 = vpop.f32.mrf.mxu0
        %v1236 = vadd.f32 %v1054, %v1235
        %1237 = vmatmul.f32.gmra.mxu0 %v952
        %v1238 = vpop.f32.mrf.mxu0
        %v1239 = vadd.f32 %v1059, %v1238
        %1240 = vmatmul.f32.gmra.mxu0 %v953
        %v1241 = vpop.f32.mrf.mxu0
        %v1242 = vadd.f32 %v1064, %v1241
        %1243 = vdwg.mxu0
        %v1244 = vtanh.pop %v1197
        %v1245 = vtanh.pop %v1200
        %v1246 = vtanh.pop %v1203
        %v1247 = vtanh.pop %v1206
        %v1248 = vtanh.pop %v1209
        %v1249 = vtanh.pop %v1212
        %v1250 = vtanh.pop %v1215
        %v1251 = vtanh.pop %v1218
        %v1252 = vtanh.pop %v1221
        %v1253 = vtanh.pop %v1224
        %v1254 = vtanh.pop %v1227
        %v1255 = vtanh.pop %v1230
        %v1256 = vtanh.pop %v1233
        %v1257 = vtanh.pop %v1236
        %v1258 = vtanh.pop %v1239
        %v1259 = vtanh.pop %v1242
        %1260 = vst [vmem:[#allocation3 + $0x8] sm:$0xff] %v1244
        %1261 = vst [vmem:[#allocation3 + $0x28] sm:$0xff] %v1245
        %1262 = vst [vmem:[#allocation3 + $0x48] sm:$0xff] %v1246
        %1263 = vst [vmem:[#allocation3 + $0x68] sm:$0xff] %v1247
        %1264 = vst [vmem:[#allocation3 + $0x88] sm:$0xff] %v1248
        %1265 = vst [vmem:[#allocation3 + $0xa8] sm:$0xff] %v1249
        %1266 = vst [vmem:[#allocation3 + $0xc8] sm:$0xff] %v1250
        %1267 = vst [vmem:[#allocation3 + $0xe8] sm:$0xff] %v1251
        %1268 = vst [vmem:[#allocation3 + $0x108] sm:$0xff] %v1252
        %1269 = vst [vmem:[#allocation3 + $0x128] sm:$0xff] %v1253
        %1270 = vst [vmem:[#allocation3 + $0x148] sm:$0xff] %v1254
        %1271 = vst [vmem:[#allocation3 + $0x168] sm:$0xff] %v1255
        %1272 = vst [vmem:[#allocation3 + $0x188] sm:$0xff] %v1256
        %1273 = vst [vmem:[#allocation3 + $0x1a8] sm:$0xff] %v1257
        %1274 = vst [vmem:[#allocation3 + $0x1c8] sm:$0xff] %v1258
        %1275 = vst [vmem:[#allocation3 + $0x1e8] sm:$0xff] %v1259
        %v1276 = vld [vmem:[#allocation2 + $0x10] sm:$0xff]
        %v1277 = vld [vmem:[#allocation2 + $0x30] sm:$0xff]
        %v1278 = vld [vmem:[#allocation2 + $0x50] sm:$0xff]
        %v1279 = vld [vmem:[#allocation2 + $0x70] sm:$0xff]
        %v1280 = vld [vmem:[#allocation2 + $0x90] sm:$0xff]
        %v1281 = vld [vmem:[#allocation2 + $0xb0] sm:$0xff]
        %v1282 = vld [vmem:[#allocation2 + $0xd0] sm:$0xff]
        %v1283 = vld [vmem:[#allocation2 + $0xf0] sm:$0xff]
        %v1284 = vld [vmem:[#allocation2 + $0x110] sm:$0xff]
        %v1285 = vld [vmem:[#allocation2 + $0x130] sm:$0xff]
        %v1286 = vld [vmem:[#allocation2 + $0x150] sm:$0xff]
        %v1287 = vld [vmem:[#allocation2 + $0x170] sm:$0xff]
        %v1288 = vld [vmem:[#allocation2 + $0x190] sm:$0xff]
        %v1289 = vld [vmem:[#allocation2 + $0x1b0] sm:$0xff]
        %v1290 = vld [vmem:[#allocation2 + $0x1d0] sm:$0xff]
        %v1291 = vld [vmem:[#allocation2 + $0x1f0] sm:$0xff]
        %1292 = vmatpush.msra.mxu0 %v1291
        %1293 = vmatpush.msra.mxu0 %v1290
        %1294 = vmatpush.msra.mxu0 %v1289
        %1295 = vmatpush.msra.mxu0 %v1288
        %1296 = vmatpush.msra.mxu0 %v1287
        %1297 = vmatpush.msra.mxu0 %v1286
        %1298 = vmatpush.msra.mxu0 %v1285
        %1299 = vmatpush.msra.mxu0 %v1284
        %1300 = vmatpush.msra.mxu0 %v1283
        %1301 = vmatpush.msra.mxu0 %v1282
        %1302 = vmatpush.msra.mxu0 %v1281
        %1303 = vmatpush.msra.mxu0 %v1280
        %1304 = vmatpush.msra.mxu0 %v1279
        %1305 = vmatpush.msra.mxu0 %v1278
        %1306 = vmatpush.msra.mxu0 %v1277
        %1307 = vmatpush.msra.mxu0 %v1276
        %1308 = vmatmul.f32.gmra.mxu0 %v938
        %v1309 = vpop.f32.mrf.mxu0
        %v1310 = vadd.f32 %v989, %v1309
        %1311 = vmatmul.f32.gmra.mxu0 %v939
        %v1312 = vpop.f32.mrf.mxu0
        %v1313 = vadd.f32 %v994, %v1312
        %1314 = vmatmul.f32.gmra.mxu0 %v940
        %v1315 = vpop.f32.mrf.mxu0
        %v1316 = vadd.f32 %v999, %v1315
        %1317 = vmatmul.f32.gmra.mxu0 %v941
        %v1318 = vpop.f32.mrf.mxu0
        %v1319 = vadd.f32 %v1004, %v1318
        %1320 = vmatmul.f32.gmra.mxu0 %v942
        %v1321 = vpop.f32.mrf.mxu0
        %v1322 = vadd.f32 %v1009, %v1321
        %1323 = vmatmul.f32.gmra.mxu0 %v943
        %v1324 = vpop.f32.mrf.mxu0
        %v1325 = vadd.f32 %v1014, %v1324
        %1326 = vmatmul.f32.gmra.mxu0 %v944
        %v1327 = vpop.f32.mrf.mxu0
        %v1328 = vadd.f32 %v1019, %v1327
        %1329 = vmatmul.f32.gmra.mxu0 %v945
        %v1330 = vpop.f32.mrf.mxu0
        %v1331 = vadd.f32 %v1024, %v1330
        %1332 = vmatmul.f32.gmra.mxu0 %v946
        %v1333 = vpop.f32.mrf.mxu0
        %v1334 = vadd.f32 %v1029, %v1333
        %1335 = vmatmul.f32.gmra.mxu0 %v947
        %v1336 = vpop.f32.mrf.mxu0
        %v1337 = vadd.f32 %v1034, %v1336
        %1338 = vmatmul.f32.gmra.mxu0 %v948
        %v1339 = vpop.f32.mrf.mxu0
        %v1340 = vadd.f32 %v1039, %v1339
        %1341 = vmatmul.f32.gmra.mxu0 %v949
        %v1342 = vpop.f32.mrf.mxu0
        %v1343 = vadd.f32 %v1044, %v1342
        %1344 = vmatmul.f32.gmra.mxu0 %v950
        %v1345 = vpop.f32.mrf.mxu0
        %v1346 = vadd.f32 %v1049, %v1345
        %1347 = vmatmul.f32.gmra.mxu0 %v951
        %v1348 = vpop.f32.mrf.mxu0
        %v1349 = vadd.f32 %v1054, %v1348
        %1350 = vmatmul.f32.gmra.mxu0 %v952
        %v1351 = vpop.f32.mrf.mxu0
        %v1352 = vadd.f32 %v1059, %v1351
        %1353 = vmatmul.f32.gmra.mxu0 %v953
        %v1354 = vpop.f32.mrf.mxu0
        %v1355 = vadd.f32 %v1064, %v1354
        %1356 = vdwg.mxu0
        %v1357 = vtanh.pop %v1310
        %v1358 = vtanh.pop %v1313
        %v1359 = vtanh.pop %v1316
        %v1360 = vtanh.pop %v1319
        %v1361 = vtanh.pop %v1322
        %v1362 = vtanh.pop %v1325
        %v1363 = vtanh.pop %v1328
        %v1364 = vtanh.pop %v1331
        %v1365 = vtanh.pop %v1334
        %v1366 = vtanh.pop %v1337
        %v1367 = vtanh.pop %v1340
        %v1368 = vtanh.pop %v1343
        %v1369 = vtanh.pop %v1346
        %v1370 = vtanh.pop %v1349
        %v1371 = vtanh.pop %v1352
        %v1372 = vtanh.pop %v1355
        %1373 = vst [vmem:[#allocation3 + $0x10] sm:$0xff] %v1357
        %1374 = vst [vmem:[#allocation3 + $0x30] sm:$0xff] %v1358
        %1375 = vst [vmem:[#allocation3 + $0x50] sm:$0xff] %v1359
        %1376 = vst [vmem:[#allocation3 + $0x70] sm:$0xff] %v1360
        %1377 = vst [vmem:[#allocation3 + $0x90] sm:$0xff] %v1361
        %1378 = vst [vmem:[#allocation3 + $0xb0] sm:$0xff] %v1362
        %1379 = vst [vmem:[#allocation3 + $0xd0] sm:$0xff] %v1363
        %1380 = vst [vmem:[#allocation3 + $0xf0] sm:$0xff] %v1364
        %1381 = vst [vmem:[#allocation3 + $0x110] sm:$0xff] %v1365
        %1382 = vst [vmem:[#allocation3 + $0x130] sm:$0xff] %v1366
        %1383 = vst [vmem:[#allocation3 + $0x150] sm:$0xff] %v1367
        %1384 = vst [vmem:[#allocation3 + $0x170] sm:$0xff] %v1368
        %1385 = vst [vmem:[#allocation3 + $0x190] sm:$0xff] %v1369
        %1386 = vst [vmem:[#allocation3 + $0x1b0] sm:$0xff] %v1370
        %1387 = vst [vmem:[#allocation3 + $0x1d0] sm:$0xff] %v1371
        %1388 = vst [vmem:[#allocation3 + $0x1f0] sm:$0xff] %v1372
        %v1389 = vld [vmem:[#allocation2 + $0x18] sm:$0xff]
        %v1390 = vld [vmem:[#allocation2 + $0x38] sm:$0xff]
        %v1391 = vld [vmem:[#allocation2 + $0x58] sm:$0xff]
        %v1392 = vld [vmem:[#allocation2 + $0x78] sm:$0xff]
        %v1393 = vld [vmem:[#allocation2 + $0x98] sm:$0xff]
        %v1394 = vld [vmem:[#allocation2 + $0xb8] sm:$0xff]
        %v1395 = vld [vmem:[#allocation2 + $0xd8] sm:$0xff]
        %v1396 = vld [vmem:[#allocation2 + $0xf8] sm:$0xff]
        %v1397 = vld [vmem:[#allocation2 + $0x118] sm:$0xff]
        %v1398 = vld [vmem:[#allocation2 + $0x138] sm:$0xff]
        %v1399 = vld [vmem:[#allocation2 + $0x158] sm:$0xff]
        %v1400 = vld [vmem:[#allocation2 + $0x178] sm:$0xff]
        %v1401 = vld [vmem:[#allocation2 + $0x198] sm:$0xff]
        %v1402 = vld [vmem:[#allocation2 + $0x1b8] sm:$0xff]
        %v1403 = vld [vmem:[#allocation2 + $0x1d8] sm:$0xff]
        %v1404 = vld [vmem:[#allocation2 + $0x1f8] sm:$0xff]
        %1405 = vmatpush.msra.mxu0 %v1404
        %1406 = vmatpush.msra.mxu0 %v1403
        %1407 = vmatpush.msra.mxu0 %v1402
        %1408 = vmatpush.msra.mxu0 %v1401
        %1409 = vmatpush.msra.mxu0 %v1400
        %1410 = vmatpush.msra.mxu0 %v1399
        %1411 = vmatpush.msra.mxu0 %v1398
        %1412 = vmatpush.msra.mxu0 %v1397
        %1413 = vmatpush.msra.mxu0 %v1396
        %1414 = vmatpush.msra.mxu0 %v1395
        %1415 = vmatpush.msra.mxu0 %v1394
        %1416 = vmatpush.msra.mxu0 %v1393
        %1417 = vmatpush.msra.mxu0 %v1392
        %1418 = vmatpush.msra.mxu0 %v1391
        %1419 = vmatpush.msra.mxu0 %v1390
        %1420 = vmatpush.msra.mxu0 %v1389
        %1421 = vmatmul.f32.gmra.mxu0 %v938
        %v1422 = vpop.f32.mrf.mxu0
        %v1423 = vadd.f32 %v989, %v1422
        %1424 = vmatmul.f32.gmra.mxu0 %v939
        %v1425 = vpop.f32.mrf.mxu0
        %v1426 = vadd.f32 %v994, %v1425
        %1427 = vmatmul.f32.gmra.mxu0 %v940
        %v1428 = vpop.f32.mrf.mxu0
        %v1429 = vadd.f32 %v999, %v1428
        %1430 = vmatmul.f32.gmra.mxu0 %v941
        %v1431 = vpop.f32.mrf.mxu0
        %v1432 = vadd.f32 %v1004, %v1431
        %1433 = vmatmul.f32.gmra.mxu0 %v942
        %v1434 = vpop.f32.mrf.mxu0
        %v1435 = vadd.f32 %v1009, %v1434
        %1436 = vmatmul.f32.gmra.mxu0 %v943
        %v1437 = vpop.f32.mrf.mxu0
        %v1438 = vadd.f32 %v1014, %v1437
        %1439 = vmatmul.f32.gmra.mxu0 %v944
        %v1440 = vpop.f32.mrf.mxu0
        %v1441 = vadd.f32 %v1019, %v1440
        %1442 = vmatmul.f32.gmra.mxu0 %v945
        %v1443 = vpop.f32.mrf.mxu0
        %v1444 = vadd.f32 %v1024, %v1443
        %1445 = vmatmul.f32.gmra.mxu0 %v946
        %v1446 = vpop.f32.mrf.mxu0
        %v1447 = vadd.f32 %v1029, %v1446
        %1448 = vmatmul.f32.gmra.mxu0 %v947
        %v1449 = vpop.f32.mrf.mxu0
        %v1450 = vadd.f32 %v1034, %v1449
        %1451 = vmatmul.f32.gmra.mxu0 %v948
        %v1452 = vpop.f32.mrf.mxu0
        %v1453 = vadd.f32 %v1039, %v1452
        %1454 = vmatmul.f32.gmra.mxu0 %v949
        %v1455 = vpop.f32.mrf.mxu0
        %v1456 = vadd.f32 %v1044, %v1455
        %1457 = vmatmul.f32.gmra.mxu0 %v950
        %v1458 = vpop.f32.mrf.mxu0
        %v1459 = vadd.f32 %v1049, %v1458
        %1460 = vmatmul.f32.gmra.mxu0 %v951
        %v1461 = vpop.f32.mrf.mxu0
        %v1462 = vadd.f32 %v1054, %v1461
        %1463 = vmatmul.f32.gmra.mxu0 %v952
        %v1464 = vpop.f32.mrf.mxu0
        %v1465 = vadd.f32 %v1059, %v1464
        %1466 = vmatmul.f32.gmra.mxu0 %v953
        %v1467 = vpop.f32.mrf.mxu0
        %v1468 = vadd.f32 %v1064, %v1467
        %1469 = vdwg.mxu0
        %v1470 = vtanh.pop %v1423
        %v1471 = vtanh.pop %v1426
        %v1472 = vtanh.pop %v1429
        %v1473 = vtanh.pop %v1432
        %v1474 = vtanh.pop %v1435
        %v1475 = vtanh.pop %v1438
        %v1476 = vtanh.pop %v1441
        %v1477 = vtanh.pop %v1444
        %v1478 = vtanh.pop %v1447
        %v1479 = vtanh.pop %v1450
        %v1480 = vtanh.pop %v1453
        %v1481 = vtanh.pop %v1456
        %v1482 = vtanh.pop %v1459
        %v1483 = vtanh.pop %v1462
        %v1484 = vtanh.pop %v1465
        %v1485 = vtanh.pop %v1468
        %1486 = vst [vmem:[#allocation3 + $0x18] sm:$0xff] %v1470
        %1487 = vst [vmem:[#allocation3 + $0x38] sm:$0xff] %v1471
        %1488 = vst [vmem:[#allocation3 + $0x58] sm:$0xff] %v1472
        %1489 = vst [vmem:[#allocation3 + $0x78] sm:$0xff] %v1473
        %1490 = vst [vmem:[#allocation3 + $0x98] sm:$0xff] %v1474
        %1491 = vst [vmem:[#allocation3 + $0xb8] sm:$0xff] %v1475
        %1492 = vst [vmem:[#allocation3 + $0xd8] sm:$0xff] %v1476
        %1493 = vst [vmem:[#allocation3 + $0xf8] sm:$0xff] %v1477
        %1494 = vst [vmem:[#allocation3 + $0x118] sm:$0xff] %v1478
        %1495 = vst [vmem:[#allocation3 + $0x138] sm:$0xff] %v1479
        %1496 = vst [vmem:[#allocation3 + $0x158] sm:$0xff] %v1480
        %1497 = vst [vmem:[#allocation3 + $0x178] sm:$0xff] %v1481
        %1498 = vst [vmem:[#allocation3 + $0x198] sm:$0xff] %v1482
        %1499 = vst [vmem:[#allocation3 + $0x1b8] sm:$0xff] %v1483
        %1500 = vst [vmem:[#allocation3 + $0x1d8] sm:$0xff] %v1484
        %1501 = vst [vmem:[#allocation3 + $0x1f8] sm:$0xff] %v1485
        %s1502 = scalar_lea.vmem %s3, 128
        %v1503 = vld [vmem:[%s1502] sm:$0xff]
        %v1504 = vld [vmem:[%s1502 + $0x8] sm:$0xff]
        %v1505 = vld [vmem:[%s1502 + $0x10] sm:$0xff]
        %v1506 = vld [vmem:[%s1502 + $0x18] sm:$0xff]
        %v1507 = vld [vmem:[%s1502 + $0x20] sm:$0xff]
        %v1508 = vld [vmem:[%s1502 + $0x28] sm:$0xff]
        %v1509 = vld [vmem:[%s1502 + $0x30] sm:$0xff]
        %v1510 = vld [vmem:[%s1502 + $0x38] sm:$0xff]
        %v1511 = vld [vmem:[%s1502 + $0x40] sm:$0xff]
        %v1512 = vld [vmem:[%s1502 + $0x48] sm:$0xff]
        %v1513 = vld [vmem:[%s1502 + $0x50] sm:$0xff]
        %v1514 = vld [vmem:[%s1502 + $0x58] sm:$0xff]
        %v1515 = vld [vmem:[%s1502 + $0x60] sm:$0xff]
        %v1516 = vld [vmem:[%s1502 + $0x68] sm:$0xff]
        %v1517 = vld [vmem:[%s1502 + $0x70] sm:$0xff]
        %v1518 = vld [vmem:[%s1502 + $0x78] sm:$0xff]
        %s1519 = scalar_lea.vmem %s4, 128
        %v1520 = vld [vmem:[%s1519] sm:$0xff]
        %v1521 = vld [vmem:[%s1519 + $0x8] sm:$0xff]
        %v1522 = vld [vmem:[%s1519 + $0x10] sm:$0xff]
        %v1523 = vld [vmem:[%s1519 + $0x18] sm:$0xff]
        %v1524 = vld [vmem:[%s1519 + $0x20] sm:$0xff]
        %v1525 = vld [vmem:[%s1519 + $0x28] sm:$0xff]
        %v1526 = vld [vmem:[%s1519 + $0x30] sm:$0xff]
        %v1527 = vld [vmem:[%s1519 + $0x38] sm:$0xff]
        %v1528 = vld [vmem:[%s1519 + $0x40] sm:$0xff]
        %v1529 = vld [vmem:[%s1519 + $0x48] sm:$0xff]
        %v1530 = vld [vmem:[%s1519 + $0x50] sm:$0xff]
        %v1531 = vld [vmem:[%s1519 + $0x58] sm:$0xff]
        %v1532 = vld [vmem:[%s1519 + $0x60] sm:$0xff]
        %v1533 = vld [vmem:[%s1519 + $0x68] sm:$0xff]
        %v1534 = vld [vmem:[%s1519 + $0x70] sm:$0xff]
        %v1535 = vld [vmem:[%s1519 + $0x78] sm:$0xff]
        %v1536 = vld [vmem:[#allocation3] sm:$0xff]
        %v1537 = vld [vmem:[#allocation3 + $0x20] sm:$0xff]
        %v1538 = vld [vmem:[#allocation3 + $0x40] sm:$0xff]
        %v1539 = vld [vmem:[#allocation3 + $0x60] sm:$0xff]
        %v1540 = vld [vmem:[#allocation3 + $0x80] sm:$0xff]
        %v1541 = vld [vmem:[#allocation3 + $0xa0] sm:$0xff]
        %v1542 = vld [vmem:[#allocation3 + $0xc0] sm:$0xff]
        %v1543 = vld [vmem:[#allocation3 + $0xe0] sm:$0xff]
        %v1544 = vld [vmem:[#allocation3 + $0x100] sm:$0xff]
        %v1545 = vld [vmem:[#allocation3 + $0x120] sm:$0xff]
        %v1546 = vld [vmem:[#allocation3 + $0x140] sm:$0xff]
        %v1547 = vld [vmem:[#allocation3 + $0x160] sm:$0xff]
        %v1548 = vld [vmem:[#allocation3 + $0x180] sm:$0xff]
        %v1549 = vld [vmem:[#allocation3 + $0x1a0] sm:$0xff]
        %v1550 = vld [vmem:[#allocation3 + $0x1c0] sm:$0xff]
        %v1551 = vld [vmem:[#allocation3 + $0x1e0] sm:$0xff]
        %1553 = vset.pattern.permute.xlu0 0
        %1554 = vperm.xlu0 %1553, %v1520
        %v1555 = vpop.permute.xlu0 %1554
        %1558 = vset.pattern.permute.xlu0 0
        %1559 = vperm.xlu0 %1558, %v1521
        %v1560 = vpop.permute.xlu0 %1559
        %1563 = vset.pattern.permute.xlu0 0
        %1564 = vperm.xlu0 %1563, %v1522
        %v1565 = vpop.permute.xlu0 %1564
        %1568 = vset.pattern.permute.xlu0 0
        %1569 = vperm.xlu0 %1568, %v1523
        %v1570 = vpop.permute.xlu0 %1569
        %1573 = vset.pattern.permute.xlu0 0
        %1574 = vperm.xlu0 %1573, %v1524
        %v1575 = vpop.permute.xlu0 %1574
        %1578 = vset.pattern.permute.xlu0 0
        %1579 = vperm.xlu0 %1578, %v1525
        %v1580 = vpop.permute.xlu0 %1579
        %1583 = vset.pattern.permute.xlu0 0
        %1584 = vperm.xlu0 %1583, %v1526
        %v1585 = vpop.permute.xlu0 %1584
        %1588 = vset.pattern.permute.xlu0 0
        %1589 = vperm.xlu0 %1588, %v1527
        %v1590 = vpop.permute.xlu0 %1589
        %1593 = vset.pattern.permute.xlu0 0
        %1594 = vperm.xlu0 %1593, %v1528
        %v1595 = vpop.permute.xlu0 %1594
        %1598 = vset.pattern.permute.xlu0 0
        %1599 = vperm.xlu0 %1598, %v1529
        %v1600 = vpop.permute.xlu0 %1599
        %1603 = vset.pattern.permute.xlu0 0
        %1604 = vperm.xlu0 %1603, %v1530
        %v1605 = vpop.permute.xlu0 %1604
        %1608 = vset.pattern.permute.xlu0 0
        %1609 = vperm.xlu0 %1608, %v1531
        %v1610 = vpop.permute.xlu0 %1609
        %1613 = vset.pattern.permute.xlu0 0
        %1614 = vperm.xlu0 %1613, %v1532
        %v1615 = vpop.permute.xlu0 %1614
        %1618 = vset.pattern.permute.xlu0 0
        %1619 = vperm.xlu0 %1618, %v1533
        %v1620 = vpop.permute.xlu0 %1619
        %1623 = vset.pattern.permute.xlu0 0
        %1624 = vperm.xlu0 %1623, %v1534
        %v1625 = vpop.permute.xlu0 %1624
        %1628 = vset.pattern.permute.xlu0 0
        %1629 = vperm.xlu0 %1628, %v1535
        %v1630 = vpop.permute.xlu0 %1629
        %1632 = vmatpush.msra.mxu0 %v1551
        %1633 = vmatpush.msra.mxu0 %v1550
        %1634 = vmatpush.msra.mxu0 %v1549
        %1635 = vmatpush.msra.mxu0 %v1548
        %1636 = vmatpush.msra.mxu0 %v1547
        %1637 = vmatpush.msra.mxu0 %v1546
        %1638 = vmatpush.msra.mxu0 %v1545
        %1639 = vmatpush.msra.mxu0 %v1544
        %1640 = vmatpush.msra.mxu0 %v1543
        %1641 = vmatpush.msra.mxu0 %v1542
        %1642 = vmatpush.msra.mxu0 %v1541
        %1643 = vmatpush.msra.mxu0 %v1540
        %1644 = vmatpush.msra.mxu0 %v1539
        %1645 = vmatpush.msra.mxu0 %v1538
        %1646 = vmatpush.msra.mxu0 %v1537
        %1647 = vmatpush.msra.mxu0 %v1536
        %1648 = vmatmul.f32.gmra.mxu0 %v1503
        %v1649 = vpop.f32.mrf.mxu0
        %v1650 = vadd.f32 %v1555, %v1649
        %1651 = vmatmul.f32.gmra.mxu0 %v1504
        %v1652 = vpop.f32.mrf.mxu0
        %v1653 = vadd.f32 %v1560, %v1652
        %1654 = vmatmul.f32.gmra.mxu0 %v1505
        %v1655 = vpop.f32.mrf.mxu0
        %v1656 = vadd.f32 %v1565, %v1655
        %1657 = vmatmul.f32.gmra.mxu0 %v1506
        %v1658 = vpop.f32.mrf.mxu0
        %v1659 = vadd.f32 %v1570, %v1658
        %1660 = vmatmul.f32.gmra.mxu0 %v1507
        %v1661 = vpop.f32.mrf.mxu0
        %v1662 = vadd.f32 %v1575, %v1661
        %1663 = vmatmul.f32.gmra.mxu0 %v1508
        %v1664 = vpop.f32.mrf.mxu0
        %v1665 = vadd.f32 %v1580, %v1664
        %1666 = vmatmul.f32.gmra.mxu0 %v1509
        %v1667 = vpop.f32.mrf.mxu0
        %v1668 = vadd.f32 %v1585, %v1667
        %1669 = vmatmul.f32.gmra.mxu0 %v1510
        %v1670 = vpop.f32.mrf.mxu0
        %v1671 = vadd.f32 %v1590, %v1670
        %1672 = vmatmul.f32.gmra.mxu0 %v1511
        %v1673 = vpop.f32.mrf.mxu0
        %v1674 = vadd.f32 %v1595, %v1673
        %1675 = vmatmul.f32.gmra.mxu0 %v1512
        %v1676 = vpop.f32.mrf.mxu0
        %v1677 = vadd.f32 %v1600, %v1676
        %1678 = vmatmul.f32.gmra.mxu0 %v1513
        %v1679 = vpop.f32.mrf.mxu0
        %v1680 = vadd.f32 %v1605, %v1679
        %1681 = vmatmul.f32.gmra.mxu0 %v1514
        %v1682 = vpop.f32.mrf.mxu0
        %v1683 = vadd.f32 %v1610, %v1682
        %1684 = vmatmul.f32.gmra.mxu0 %v1515
        %v1685 = vpop.f32.mrf.mxu0
        %v1686 = vadd.f32 %v1615, %v1685
        %1687 = vmatmul.f32.gmra.mxu0 %v1516
        %v1688 = vpop.f32.mrf.mxu0
        %v1689 = vadd.f32 %v1620, %v1688
        %1690 = vmatmul.f32.gmra.mxu0 %v1517
        %v1691 = vpop.f32.mrf.mxu0
        %v1692 = vadd.f32 %v1625, %v1691
        %1693 = vmatmul.f32.gmra.mxu0 %v1518
        %v1694 = vpop.f32.mrf.mxu0
        %v1695 = vadd.f32 %v1630, %v1694
        %1696 = vdwg.mxu0
        %v1697 = vtanh.pop %v1650
        %v1698 = vtanh.pop %v1653
        %v1699 = vtanh.pop %v1656
        %v1700 = vtanh.pop %v1659
        %v1701 = vtanh.pop %v1662
        %v1702 = vtanh.pop %v1665
        %v1703 = vtanh.pop %v1668
        %v1704 = vtanh.pop %v1671
        %v1705 = vtanh.pop %v1674
        %v1706 = vtanh.pop %v1677
        %v1707 = vtanh.pop %v1680
        %v1708 = vtanh.pop %v1683
        %v1709 = vtanh.pop %v1686
        %v1710 = vtanh.pop %v1689
        %v1711 = vtanh.pop %v1692
        %v1712 = vtanh.pop %v1695
        %1713 = vst [vmem:[#allocation2] sm:$0xff] %v1697
        %1714 = vst [vmem:[#allocation2 + $0x20] sm:$0xff] %v1698
        %1715 = vst [vmem:[#allocation2 + $0x40] sm:$0xff] %v1699
        %1716 = vst [vmem:[#allocation2 + $0x60] sm:$0xff] %v1700
        %1717 = vst [vmem:[#allocation2 + $0x80] sm:$0xff] %v1701
        %1718 = vst [vmem:[#allocation2 + $0xa0] sm:$0xff] %v1702
        %1719 = vst [vmem:[#allocation2 + $0xc0] sm:$0xff] %v1703
        %1720 = vst [vmem:[#allocation2 + $0xe0] sm:$0xff] %v1704
        %1721 = vst [vmem:[#allocation2 + $0x100] sm:$0xff] %v1705
        %1722 = vst [vmem:[#allocation2 + $0x120] sm:$0xff] %v1706
        %1723 = vst [vmem:[#allocation2 + $0x140] sm:$0xff] %v1707
        %1724 = vst [vmem:[#allocation2 + $0x160] sm:$0xff] %v1708
        %1725 = vst [vmem:[#allocation2 + $0x180] sm:$0xff] %v1709
        %1726 = vst [vmem:[#allocation2 + $0x1a0] sm:$0xff] %v1710
        %1727 = vst [vmem:[#allocation2 + $0x1c0] sm:$0xff] %v1711
        %1728 = vst [vmem:[#allocation2 + $0x1e0] sm:$0xff] %v1712
        %v1729 = vld [vmem:[#allocation3 + $0x8] sm:$0xff]
        %v1730 = vld [vmem:[#allocation3 + $0x28] sm:$0xff]
        %v1731 = vld [vmem:[#allocation3 + $0x48] sm:$0xff]
        %v1732 = vld [vmem:[#allocation3 + $0x68] sm:$0xff]
        %v1733 = vld [vmem:[#allocation3 + $0x88] sm:$0xff]
        %v1734 = vld [vmem:[#allocation3 + $0xa8] sm:$0xff]
        %v1735 = vld [vmem:[#allocation3 + $0xc8] sm:$0xff]
        %v1736 = vld [vmem:[#allocation3 + $0xe8] sm:$0xff]
        %v1737 = vld [vmem:[#allocation3 + $0x108] sm:$0xff]
        %v1738 = vld [vmem:[#allocation3 + $0x128] sm:$0xff]
        %v1739 = vld [vmem:[#allocation3 + $0x148] sm:$0xff]
        %v1740 = vld [vmem:[#allocation3 + $0x168] sm:$0xff]
        %v1741 = vld [vmem:[#allocation3 + $0x188] sm:$0xff]
        %v1742 = vld [vmem:[#allocation3 + $0x1a8] sm:$0xff]
        %v1743 = vld [vmem:[#allocation3 + $0x1c8] sm:$0xff]
        %v1744 = vld [vmem:[#allocation3 + $0x1e8] sm:$0xff]
        %1745 = vmatpush.msra.mxu0 %v1744
        %1746 = vmatpush.msra.mxu0 %v1743
        %1747 = vmatpush.msra.mxu0 %v1742
        %1748 = vmatpush.msra.mxu0 %v1741
        %1749 = vmatpush.msra.mxu0 %v1740
        %1750 = vmatpush.msra.mxu0 %v1739
        %1751 = vmatpush.msra.mxu0 %v1738
        %1752 = vmatpush.msra.mxu0 %v1737
        %1753 = vmatpush.msra.mxu0 %v1736
        %1754 = vmatpush.msra.mxu0 %v1735
        %1755 = vmatpush.msra.mxu0 %v1734
        %1756 = vmatpush.msra.mxu0 %v1733
        %1757 = vmatpush.msra.mxu0 %v1732
        %1758 = vmatpush.msra.mxu0 %v1731
        %1759 = vmatpush.msra.mxu0 %v1730
        %1760 = vmatpush.msra.mxu0 %v1729
        %1761 = vmatmul.f32.gmra.mxu0 %v1503
        %v1762 = vpop.f32.mrf.mxu0
        %v1763 = vadd.f32 %v1555, %v1762
        %1764 = vmatmul.f32.gmra.mxu0 %v1504
        %v1765 = vpop.f32.mrf.mxu0
        %v1766 = vadd.f32 %v1560, %v1765
        %1767 = vmatmul.f32.gmra.mxu0 %v1505
        %v1768 = vpop.f32.mrf.mxu0
        %v1769 = vadd.f32 %v1565, %v1768
        %1770 = vmatmul.f32.gmra.mxu0 %v1506
        %v1771 = vpop.f32.mrf.mxu0
        %v1772 = vadd.f32 %v1570, %v1771
        %1773 = vmatmul.f32.gmra.mxu0 %v1507
        %v1774 = vpop.f32.mrf.mxu0
        %v1775 = vadd.f32 %v1575, %v1774
        %1776 = vmatmul.f32.gmra.mxu0 %v1508
        %v1777 = vpop.f32.mrf.mxu0
        %v1778 = vadd.f32 %v1580, %v1777
        %1779 = vmatmul.f32.gmra.mxu0 %v1509
        %v1780 = vpop.f32.mrf.mxu0
        %v1781 = vadd.f32 %v1585, %v1780
        %1782 = vmatmul.f32.gmra.mxu0 %v1510
        %v1783 = vpop.f32.mrf.mxu0
        %v1784 = vadd.f32 %v1590, %v1783
        %1785 = vmatmul.f32.gmra.mxu0 %v1511
        %v1786 = vpop.f32.mrf.mxu0
        %v1787 = vadd.f32 %v1595, %v1786
        %1788 = vmatmul.f32.gmra.mxu0 %v1512
        %v1789 = vpop.f32.mrf.mxu0
        %v1790 = vadd.f32 %v1600, %v1789
        %1791 = vmatmul.f32.gmra.mxu0 %v1513
        %v1792 = vpop.f32.mrf.mxu0
        %v1793 = vadd.f32 %v1605, %v1792
        %1794 = vmatmul.f32.gmra.mxu0 %v1514
        %v1795 = vpop.f32.mrf.mxu0
        %v1796 = vadd.f32 %v1610, %v1795
        %1797 = vmatmul.f32.gmra.mxu0 %v1515
        %v1798 = vpop.f32.mrf.mxu0
        %v1799 = vadd.f32 %v1615, %v1798
        %1800 = vmatmul.f32.gmra.mxu0 %v1516
        %v1801 = vpop.f32.mrf.mxu0
        %v1802 = vadd.f32 %v1620, %v1801
        %1803 = vmatmul.f32.gmra.mxu0 %v1517
        %v1804 = vpop.f32.mrf.mxu0
        %v1805 = vadd.f32 %v1625, %v1804
        %1806 = vmatmul.f32.gmra.mxu0 %v1518
        %v1807 = vpop.f32.mrf.mxu0
        %v1808 = vadd.f32 %v1630, %v1807
        %1809 = vdwg.mxu0
        %v1810 = vtanh.pop %v1763
        %v1811 = vtanh.pop %v1766
        %v1812 = vtanh.pop %v1769
        %v1813 = vtanh.pop %v1772
        %v1814 = vtanh.pop %v1775
        %v1815 = vtanh.pop %v1778
        %v1816 = vtanh.pop %v1781
        %v1817 = vtanh.pop %v1784
        %v1818 = vtanh.pop %v1787
        %v1819 = vtanh.pop %v1790
        %v1820 = vtanh.pop %v1793
        %v1821 = vtanh.pop %v1796
        %v1822 = vtanh.pop %v1799
        %v1823 = vtanh.pop %v1802
        %v1824 = vtanh.pop %v1805
        %v1825 = vtanh.pop %v1808
        %1826 = vst [vmem:[#allocation2 + $0x8] sm:$0xff] %v1810
        %1827 = vst [vmem:[#allocation2 + $0x28] sm:$0xff] %v1811
        %1828 = vst [vmem:[#allocation2 + $0x48] sm:$0xff] %v1812
        %1829 = vst [vmem:[#allocation2 + $0x68] sm:$0xff] %v1813
        %1830 = vst [vmem:[#allocation2 + $0x88] sm:$0xff] %v1814
        %1831 = vst [vmem:[#allocation2 + $0xa8] sm:$0xff] %v1815
        %1832 = vst [vmem:[#allocation2 + $0xc8] sm:$0xff] %v1816
        %1833 = vst [vmem:[#allocation2 + $0xe8] sm:$0xff] %v1817
        %1834 = vst [vmem:[#allocation2 + $0x108] sm:$0xff] %v1818
        %1835 = vst [vmem:[#allocation2 + $0x128] sm:$0xff] %v1819
        %1836 = vst [vmem:[#allocation2 + $0x148] sm:$0xff] %v1820
        %1837 = vst [vmem:[#allocation2 + $0x168] sm:$0xff] %v1821
        %1838 = vst [vmem:[#allocation2 + $0x188] sm:$0xff] %v1822
        %1839 = vst [vmem:[#allocation2 + $0x1a8] sm:$0xff] %v1823
        %1840 = vst [vmem:[#allocation2 + $0x1c8] sm:$0xff] %v1824
        %1841 = vst [vmem:[#allocation2 + $0x1e8] sm:$0xff] %v1825
        %v1842 = vld [vmem:[#allocation3 + $0x10] sm:$0xff]
        %v1843 = vld [vmem:[#allocation3 + $0x30] sm:$0xff]
        %v1844 = vld [vmem:[#allocation3 + $0x50] sm:$0xff]
        %v1845 = vld [vmem:[#allocation3 + $0x70] sm:$0xff]
        %v1846 = vld [vmem:[#allocation3 + $0x90] sm:$0xff]
        %v1847 = vld [vmem:[#allocation3 + $0xb0] sm:$0xff]
        %v1848 = vld [vmem:[#allocation3 + $0xd0] sm:$0xff]
        %v1849 = vld [vmem:[#allocation3 + $0xf0] sm:$0xff]
        %v1850 = vld [vmem:[#allocation3 + $0x110] sm:$0xff]
        %v1851 = vld [vmem:[#allocation3 + $0x130] sm:$0xff]
        %v1852 = vld [vmem:[#allocation3 + $0x150] sm:$0xff]
        %v1853 = vld [vmem:[#allocation3 + $0x170] sm:$0xff]
        %v1854 = vld [vmem:[#allocation3 + $0x190] sm:$0xff]
        %v1855 = vld [vmem:[#allocation3 + $0x1b0] sm:$0xff]
        %v1856 = vld [vmem:[#allocation3 + $0x1d0] sm:$0xff]
        %v1857 = vld [vmem:[#allocation3 + $0x1f0] sm:$0xff]
        %1858 = vmatpush.msra.mxu0 %v1857
        %1859 = vmatpush.msra.mxu0 %v1856
        %1860 = vmatpush.msra.mxu0 %v1855
        %1861 = vmatpush.msra.mxu0 %v1854
        %1862 = vmatpush.msra.mxu0 %v1853
        %1863 = vmatpush.msra.mxu0 %v1852
        %1864 = vmatpush.msra.mxu0 %v1851
        %1865 = vmatpush.msra.mxu0 %v1850
        %1866 = vmatpush.msra.mxu0 %v1849
        %1867 = vmatpush.msra.mxu0 %v1848
        %1868 = vmatpush.msra.mxu0 %v1847
        %1869 = vmatpush.msra.mxu0 %v1846
        %1870 = vmatpush.msra.mxu0 %v1845
        %1871 = vmatpush.msra.mxu0 %v1844
        %1872 = vmatpush.msra.mxu0 %v1843
        %1873 = vmatpush.msra.mxu0 %v1842
        %1874 = vmatmul.f32.gmra.mxu0 %v1503
        %v1875 = vpop.f32.mrf.mxu0
        %v1876 = vadd.f32 %v1555, %v1875
        %1877 = vmatmul.f32.gmra.mxu0 %v1504
        %v1878 = vpop.f32.mrf.mxu0
        %v1879 = vadd.f32 %v1560, %v1878
        %1880 = vmatmul.f32.gmra.mxu0 %v1505
        %v1881 = vpop.f32.mrf.mxu0
        %v1882 = vadd.f32 %v1565, %v1881
        %1883 = vmatmul.f32.gmra.mxu0 %v1506
        %v1884 = vpop.f32.mrf.mxu0
        %v1885 = vadd.f32 %v1570, %v1884
        %1886 = vmatmul.f32.gmra.mxu0 %v1507
        %v1887 = vpop.f32.mrf.mxu0
        %v1888 = vadd.f32 %v1575, %v1887
        %1889 = vmatmul.f32.gmra.mxu0 %v1508
        %v1890 = vpop.f32.mrf.mxu0
        %v1891 = vadd.f32 %v1580, %v1890
        %1892 = vmatmul.f32.gmra.mxu0 %v1509
        %v1893 = vpop.f32.mrf.mxu0
        %v1894 = vadd.f32 %v1585, %v1893
        %1895 = vmatmul.f32.gmra.mxu0 %v1510
        %v1896 = vpop.f32.mrf.mxu0
        %v1897 = vadd.f32 %v1590, %v1896
        %1898 = vmatmul.f32.gmra.mxu0 %v1511
        %v1899 = vpop.f32.mrf.mxu0
        %v1900 = vadd.f32 %v1595, %v1899
        %1901 = vmatmul.f32.gmra.mxu0 %v1512
        %v1902 = vpop.f32.mrf.mxu0
        %v1903 = vadd.f32 %v1600, %v1902
        %1904 = vmatmul.f32.gmra.mxu0 %v1513
        %v1905 = vpop.f32.mrf.mxu0
        %v1906 = vadd.f32 %v1605, %v1905
        %1907 = vmatmul.f32.gmra.mxu0 %v1514
        %v1908 = vpop.f32.mrf.mxu0
        %v1909 = vadd.f32 %v1610, %v1908
        %1910 = vmatmul.f32.gmra.mxu0 %v1515
        %v1911 = vpop.f32.mrf.mxu0
        %v1912 = vadd.f32 %v1615, %v1911
        %1913 = vmatmul.f32.gmra.mxu0 %v1516
        %v1914 = vpop.f32.mrf.mxu0
        %v1915 = vadd.f32 %v1620, %v1914
        %1916 = vmatmul.f32.gmra.mxu0 %v1517
        %v1917 = vpop.f32.mrf.mxu0
        %v1918 = vadd.f32 %v1625, %v1917
        %1919 = vmatmul.f32.gmra.mxu0 %v1518
        %v1920 = vpop.f32.mrf.mxu0
        %v1921 = vadd.f32 %v1630, %v1920
        %1922 = vdwg.mxu0
        %v1923 = vtanh.pop %v1876
        %v1924 = vtanh.pop %v1879
        %v1925 = vtanh.pop %v1882
        %v1926 = vtanh.pop %v1885
        %v1927 = vtanh.pop %v1888
        %v1928 = vtanh.pop %v1891
        %v1929 = vtanh.pop %v1894
        %v1930 = vtanh.pop %v1897
        %v1931 = vtanh.pop %v1900
        %v1932 = vtanh.pop %v1903
        %v1933 = vtanh.pop %v1906
        %v1934 = vtanh.pop %v1909
        %v1935 = vtanh.pop %v1912
        %v1936 = vtanh.pop %v1915
        %v1937 = vtanh.pop %v1918
        %v1938 = vtanh.pop %v1921
        %1939 = vst [vmem:[#allocation2 + $0x10] sm:$0xff] %v1923
        %1940 = vst [vmem:[#allocation2 + $0x30] sm:$0xff] %v1924
        %1941 = vst [vmem:[#allocation2 + $0x50] sm:$0xff] %v1925
        %1942 = vst [vmem:[#allocation2 + $0x70] sm:$0xff] %v1926
        %1943 = vst [vmem:[#allocation2 + $0x90] sm:$0xff] %v1927
        %1944 = vst [vmem:[#allocation2 + $0xb0] sm:$0xff] %v1928
        %1945 = vst [vmem:[#allocation2 + $0xd0] sm:$0xff] %v1929
        %1946 = vst [vmem:[#allocation2 + $0xf0] sm:$0xff] %v1930
        %1947 = vst [vmem:[#allocation2 + $0x110] sm:$0xff] %v1931
        %1948 = vst [vmem:[#allocation2 + $0x130] sm:$0xff] %v1932
        %1949 = vst [vmem:[#allocation2 + $0x150] sm:$0xff] %v1933
        %1950 = vst [vmem:[#allocation2 + $0x170] sm:$0xff] %v1934
        %1951 = vst [vmem:[#allocation2 + $0x190] sm:$0xff] %v1935
        %1952 = vst [vmem:[#allocation2 + $0x1b0] sm:$0xff] %v1936
        %1953 = vst [vmem:[#allocation2 + $0x1d0] sm:$0xff] %v1937
        %1954 = vst [vmem:[#allocation2 + $0x1f0] sm:$0xff] %v1938
        %v1955 = vld [vmem:[#allocation3 + $0x18] sm:$0xff]
        %v1956 = vld [vmem:[#allocation3 + $0x38] sm:$0xff]
        %v1957 = vld [vmem:[#allocation3 + $0x58] sm:$0xff]
        %v1958 = vld [vmem:[#allocation3 + $0x78] sm:$0xff]
        %v1959 = vld [vmem:[#allocation3 + $0x98] sm:$0xff]
        %v1960 = vld [vmem:[#allocation3 + $0xb8] sm:$0xff]
        %v1961 = vld [vmem:[#allocation3 + $0xd8] sm:$0xff]
        %v1962 = vld [vmem:[#allocation3 + $0xf8] sm:$0xff]
        %v1963 = vld [vmem:[#allocation3 + $0x118] sm:$0xff]
        %v1964 = vld [vmem:[#allocation3 + $0x138] sm:$0xff]
        %v1965 = vld [vmem:[#allocation3 + $0x158] sm:$0xff]
        %v1966 = vld [vmem:[#allocation3 + $0x178] sm:$0xff]
        %v1967 = vld [vmem:[#allocation3 + $0x198] sm:$0xff]
        %v1968 = vld [vmem:[#allocation3 + $0x1b8] sm:$0xff]
        %v1969 = vld [vmem:[#allocation3 + $0x1d8] sm:$0xff]
        %v1970 = vld [vmem:[#allocation3 + $0x1f8] sm:$0xff]
        %1971 = vmatpush.msra.mxu0 %v1970
        %1972 = vmatpush.msra.mxu0 %v1969
        %1973 = vmatpush.msra.mxu0 %v1968
        %1974 = vmatpush.msra.mxu0 %v1967
        %1975 = vmatpush.msra.mxu0 %v1966
        %1976 = vmatpush.msra.mxu0 %v1965
        %1977 = vmatpush.msra.mxu0 %v1964
        %1978 = vmatpush.msra.mxu0 %v1963
        %1979 = vmatpush.msra.mxu0 %v1962
        %1980 = vmatpush.msra.mxu0 %v1961
        %1981 = vmatpush.msra.mxu0 %v1960
        %1982 = vmatpush.msra.mxu0 %v1959
        %1983 = vmatpush.msra.mxu0 %v1958
        %1984 = vmatpush.msra.mxu0 %v1957
        %1985 = vmatpush.msra.mxu0 %v1956
        %1986 = vmatpush.msra.mxu0 %v1955
        %1987 = vmatmul.f32.gmra.mxu0 %v1503
        %v1988 = vpop.f32.mrf.mxu0
        %v1989 = vadd.f32 %v1555, %v1988
        %1990 = vmatmul.f32.gmra.mxu0 %v1504
        %v1991 = vpop.f32.mrf.mxu0
        %v1992 = vadd.f32 %v1560, %v1991
        %1993 = vmatmul.f32.gmra.mxu0 %v1505
        %v1994 = vpop.f32.mrf.mxu0
        %v1995 = vadd.f32 %v1565, %v1994
        %1996 = vmatmul.f32.gmra.mxu0 %v1506
        %v1997 = vpop.f32.mrf.mxu0
        %v1998 = vadd.f32 %v1570, %v1997
        %1999 = vmatmul.f32.gmra.mxu0 %v1507
        %v2000 = vpop.f32.mrf.mxu0
        %v2001 = vadd.f32 %v1575, %v2000
        %2002 = vmatmul.f32.gmra.mxu0 %v1508
        %v2003 = vpop.f32.mrf.mxu0
        %v2004 = vadd.f32 %v1580, %v2003
        %2005 = vmatmul.f32.gmra.mxu0 %v1509
        %v2006 = vpop.f32.mrf.mxu0
        %v2007 = vadd.f32 %v1585, %v2006
        %2008 = vmatmul.f32.gmra.mxu0 %v1510
        %v2009 = vpop.f32.mrf.mxu0
        %v2010 = vadd.f32 %v1590, %v2009
        %2011 = vmatmul.f32.gmra.mxu0 %v1511
        %v2012 = vpop.f32.mrf.mxu0
        %v2013 = vadd.f32 %v1595, %v2012
        %2014 = vmatmul.f32.gmra.mxu0 %v1512
        %v2015 = vpop.f32.mrf.mxu0
        %v2016 = vadd.f32 %v1600, %v2015
        %2017 = vmatmul.f32.gmra.mxu0 %v1513
        %v2018 = vpop.f32.mrf.mxu0
        %v2019 = vadd.f32 %v1605, %v2018
        %2020 = vmatmul.f32.gmra.mxu0 %v1514
        %v2021 = vpop.f32.mrf.mxu0
        %v2022 = vadd.f32 %v1610, %v2021
        %2023 = vmatmul.f32.gmra.mxu0 %v1515
        %v2024 = vpop.f32.mrf.mxu0
        %v2025 = vadd.f32 %v1615, %v2024
        %2026 = vmatmul.f32.gmra.mxu0 %v1516
        %v2027 = vpop.f32.mrf.mxu0
        %v2028 = vadd.f32 %v1620, %v2027
        %2029 = vmatmul.f32.gmra.mxu0 %v1517
        %v2030 = vpop.f32.mrf.mxu0
        %v2031 = vadd.f32 %v1625, %v2030
        %2032 = vmatmul.f32.gmra.mxu0 %v1518
        %v2033 = vpop.f32.mrf.mxu0
        %v2034 = vadd.f32 %v1630, %v2033
        %2035 = vdwg.mxu0
        %v2036 = vtanh.pop %v1989
        %v2037 = vtanh.pop %v1992
        %v2038 = vtanh.pop %v1995
        %v2039 = vtanh.pop %v1998
        %v2040 = vtanh.pop %v2001
        %v2041 = vtanh.pop %v2004
        %v2042 = vtanh.pop %v2007
        %v2043 = vtanh.pop %v2010
        %v2044 = vtanh.pop %v2013
        %v2045 = vtanh.pop %v2016
        %v2046 = vtanh.pop %v2019
        %v2047 = vtanh.pop %v2022
        %v2048 = vtanh.pop %v2025
        %v2049 = vtanh.pop %v2028
        %v2050 = vtanh.pop %v2031
        %v2051 = vtanh.pop %v2034
        %2052 = vst [vmem:[#allocation2 + $0x18] sm:$0xff] %v2036
        %2053 = vst [vmem:[#allocation2 + $0x38] sm:$0xff] %v2037
        %2054 = vst [vmem:[#allocation2 + $0x58] sm:$0xff] %v2038
        %2055 = vst [vmem:[#allocation2 + $0x78] sm:$0xff] %v2039
        %2056 = vst [vmem:[#allocation2 + $0x98] sm:$0xff] %v2040
        %2057 = vst [vmem:[#allocation2 + $0xb8] sm:$0xff] %v2041
        %2058 = vst [vmem:[#allocation2 + $0xd8] sm:$0xff] %v2042
        %2059 = vst [vmem:[#allocation2 + $0xf8] sm:$0xff] %v2043
        %2060 = vst [vmem:[#allocation2 + $0x118] sm:$0xff] %v2044
        %2061 = vst [vmem:[#allocation2 + $0x138] sm:$0xff] %v2045
        %2062 = vst [vmem:[#allocation2 + $0x158] sm:$0xff] %v2046
        %2063 = vst [vmem:[#allocation2 + $0x178] sm:$0xff] %v2047
        %2064 = vst [vmem:[#allocation2 + $0x198] sm:$0xff] %v2048
        %2065 = vst [vmem:[#allocation2 + $0x1b8] sm:$0xff] %v2049
        %2066 = vst [vmem:[#allocation2 + $0x1d8] sm:$0xff] %v2050
        %2067 = vst [vmem:[#allocation2 + $0x1f8] sm:$0xff] %v2051
        %v2068 = vld [vmem:[%s5] sm:$0xff]
        %v2069 = vld [vmem:[%s5 + $0x8] sm:$0xff]
        %v2070 = vld [vmem:[%s5 + $0x10] sm:$0xff]
        %v2071 = vld [vmem:[%s5 + $0x18] sm:$0xff]
        %v2072 = vld [vmem:[%s5 + $0x20] sm:$0xff]
        %v2073 = vld [vmem:[%s5 + $0x28] sm:$0xff]
        %v2074 = vld [vmem:[%s5 + $0x30] sm:$0xff]
        %v2075 = vld [vmem:[%s5 + $0x38] sm:$0xff]
        %v2076 = vld [vmem:[%s5 + $0x40] sm:$0xff]
        %v2077 = vld [vmem:[%s5 + $0x48] sm:$0xff]
        %v2078 = vld [vmem:[%s5 + $0x50] sm:$0xff]
        %v2079 = vld [vmem:[%s5 + $0x58] sm:$0xff]
        %v2080 = vld [vmem:[%s5 + $0x60] sm:$0xff]
        %v2081 = vld [vmem:[%s5 + $0x68] sm:$0xff]
        %v2082 = vld [vmem:[%s5 + $0x70] sm:$0xff]
        %v2083 = vld [vmem:[%s5 + $0x78] sm:$0xff]
        %v2084 = vld [vmem:[#allocation4] sm:$0x1]
        %v2085 = vld [vmem:[#allocation2] sm:$0xff]
        %v2086 = vld [vmem:[#allocation2 + $0x20] sm:$0xff]
        %v2087 = vld [vmem:[#allocation2 + $0x40] sm:$0xff]
        %v2088 = vld [vmem:[#allocation2 + $0x60] sm:$0xff]
        %v2089 = vld [vmem:[#allocation2 + $0x80] sm:$0xff]
        %v2090 = vld [vmem:[#allocation2 + $0xa0] sm:$0xff]
        %v2091 = vld [vmem:[#allocation2 + $0xc0] sm:$0xff]
        %v2092 = vld [vmem:[#allocation2 + $0xe0] sm:$0xff]
        %v2093 = vld [vmem:[#allocation2 + $0x100] sm:$0xff]
        %v2094 = vld [vmem:[#allocation2 + $0x120] sm:$0xff]
        %v2095 = vld [vmem:[#allocation2 + $0x140] sm:$0xff]
        %v2096 = vld [vmem:[#allocation2 + $0x160] sm:$0xff]
        %v2097 = vld [vmem:[#allocation2 + $0x180] sm:$0xff]
        %v2098 = vld [vmem:[#allocation2 + $0x1a0] sm:$0xff]
        %v2099 = vld [vmem:[#allocation2 + $0x1c0] sm:$0xff]
        %v2100 = vld [vmem:[#allocation2 + $0x1e0] sm:$0xff]
        %2102 = vset.pattern.permute.xlu0 0
        %2103 = vperm.xlu0 %2102, %v2068
        %v2104 = vpop.permute.xlu0 %2103
        %2107 = vset.pattern.permute.xlu0 0
        %2108 = vperm.xlu0 %2107, %v2069
        %v2109 = vpop.permute.xlu0 %2108
        %2112 = vset.pattern.permute.xlu0 0
        %2113 = vperm.xlu0 %2112, %v2070
        %v2114 = vpop.permute.xlu0 %2113
        %2117 = vset.pattern.permute.xlu0 0
        %2118 = vperm.xlu0 %2117, %v2071
        %v2119 = vpop.permute.xlu0 %2118
        %2122 = vset.pattern.permute.xlu0 0
        %2123 = vperm.xlu0 %2122, %v2072
        %v2124 = vpop.permute.xlu0 %2123
        %2127 = vset.pattern.permute.xlu0 0
        %2128 = vperm.xlu0 %2127, %v2073
        %v2129 = vpop.permute.xlu0 %2128
        %2132 = vset.pattern.permute.xlu0 0
        %2133 = vperm.xlu0 %2132, %v2074
        %v2134 = vpop.permute.xlu0 %2133
        %2137 = vset.pattern.permute.xlu0 0
        %2138 = vperm.xlu0 %2137, %v2075
        %v2139 = vpop.permute.xlu0 %2138
        %2142 = vset.pattern.permute.xlu0 0
        %2143 = vperm.xlu0 %2142, %v2076
        %v2144 = vpop.permute.xlu0 %2143
        %2147 = vset.pattern.permute.xlu0 0
        %2148 = vperm.xlu0 %2147, %v2077
        %v2149 = vpop.permute.xlu0 %2148
        %2152 = vset.pattern.permute.xlu0 0
        %2153 = vperm.xlu0 %2152, %v2078
        %v2154 = vpop.permute.xlu0 %2153
        %2157 = vset.pattern.permute.xlu0 0
        %2158 = vperm.xlu0 %2157, %v2079
        %v2159 = vpop.permute.xlu0 %2158
        %2162 = vset.pattern.permute.xlu0 0
        %2163 = vperm.xlu0 %2162, %v2080
        %v2164 = vpop.permute.xlu0 %2163
        %2167 = vset.pattern.permute.xlu0 0
        %2168 = vperm.xlu0 %2167, %v2081
        %v2169 = vpop.permute.xlu0 %2168
        %2172 = vset.pattern.permute.xlu0 0
        %2173 = vperm.xlu0 %2172, %v2082
        %v2174 = vpop.permute.xlu0 %2173
        %2177 = vset.pattern.permute.xlu0 0
        %2178 = vperm.xlu0 %2177, %v2083
        %v2179 = vpop.permute.xlu0 %2178
        %v2181 = vmul.f32 %v2085, %v2104
        %v2182 = vmul.f32 %v2086, %v2109
        %v2183 = vmul.f32 %v2087, %v2114
        %v2184 = vmul.f32 %v2088, %v2119
        %v2185 = vmul.f32 %v2089, %v2124
        %v2186 = vmul.f32 %v2090, %v2129
        %v2187 = vmul.f32 %v2091, %v2134
        %v2188 = vmul.f32 %v2092, %v2139
        %v2189 = vmul.f32 %v2093, %v2144
        %v2190 = vmul.f32 %v2094, %v2149
        %v2191 = vmul.f32 %v2095, %v2154
        %v2192 = vmul.f32 %v2096, %v2159
        %v2193 = vmul.f32 %v2097, %v2164
        %v2194 = vmul.f32 %v2098, %v2169
        %v2195 = vmul.f32 %v2099, %v2174
        %v2196 = vmul.f32 %v2100, %v2179
        %v2197 = vadd.f32 %v2181, %v2182
        %v2198 = vadd.f32 %v2197, %v2183
        %v2199 = vadd.f32 %v2198, %v2184
        %v2200 = vadd.f32 %v2199, %v2185
        %v2201 = vadd.f32 %v2200, %v2186
        %v2202 = vadd.f32 %v2201, %v2187
        %v2203 = vadd.f32 %v2202, %v2188
        %v2204 = vadd.f32 %v2203, %v2189
        %v2205 = vadd.f32 %v2204, %v2190
        %v2206 = vadd.f32 %v2205, %v2191
        %v2207 = vadd.f32 %v2206, %v2192
        %v2208 = vadd.f32 %v2207, %v2193
        %v2209 = vadd.f32 %v2208, %v2194
        %v2210 = vadd.f32 %v2209, %v2195
        %v2211 = vadd.f32 %v2210, %v2196
        %v2212 = vrot.slane %v2211, 4
        %v2213 = vadd.f32 %v2211, %v2212
        %v2214 = vrot.slane %v2213, 2
        %v2215 = vadd.f32 %v2213, %v2214
        %v2216 = vrot.slane %v2215, 1
        %v2217 = vadd.f32 %v2215, %v2216
        %2219 = vset.pattern.permute.xlu0 0
        %2220 = vperm.xlu0 %2219, %v2084
        %v2221 = vpop.permute.xlu0 %2220
        %v2223 = vperm.slane %v2221, 0
        %v2224 = vadd.f32 %v2217, %v2223
        %v2225 = vlaneseq
        %vm2226 = vcmp.ge.s32.totalorder %v2225, 0
        %vm2227 = vcmp.lt.s32.totalorder %v2225, 128
        %vm2228 = vmand %vm2226, %vm2227
        %2229 = vst.msk [vmem:[%s274] sm:$0x1] %vm2228, %v2224
        %v2230 = vld [vmem:[#allocation2 + $0x8] sm:$0xff]
        %v2231 = vld [vmem:[#allocation2 + $0x28] sm:$0xff]
        %v2232 = vld [vmem:[#allocation2 + $0x48] sm:$0xff]
        %v2233 = vld [vmem:[#allocation2 + $0x68] sm:$0xff]
        %v2234 = vld [vmem:[#allocation2 + $0x88] sm:$0xff]
        %v2235 = vld [vmem:[#allocation2 + $0xa8] sm:$0xff]
        %v2236 = vld [vmem:[#allocation2 + $0xc8] sm:$0xff]
        %v2237 = vld [vmem:[#allocation2 + $0xe8] sm:$0xff]
        %v2238 = vld [vmem:[#allocation2 + $0x108] sm:$0xff]
        %v2239 = vld [vmem:[#allocation2 + $0x128] sm:$0xff]
        %v2240 = vld [vmem:[#allocation2 + $0x148] sm:$0xff]
        %v2241 = vld [vmem:[#allocation2 + $0x168] sm:$0xff]
        %v2242 = vld [vmem:[#allocation2 + $0x188] sm:$0xff]
        %v2243 = vld [vmem:[#allocation2 + $0x1a8] sm:$0xff]
        %v2244 = vld [vmem:[#allocation2 + $0x1c8] sm:$0xff]
        %v2245 = vld [vmem:[#allocation2 + $0x1e8] sm:$0xff]
        %v2246 = vmul.f32 %v2230, %v2104
        %v2247 = vmul.f32 %v2231, %v2109
        %v2248 = vmul.f32 %v2232, %v2114
        %v2249 = vmul.f32 %v2233, %v2119
        %v2250 = vmul.f32 %v2234, %v2124
        %v2251 = vmul.f32 %v2235, %v2129
        %v2252 = vmul.f32 %v2236, %v2134
        %v2253 = vmul.f32 %v2237, %v2139
        %v2254 = vmul.f32 %v2238, %v2144
        %v2255 = vmul.f32 %v2239, %v2149
        %v2256 = vmul.f32 %v2240, %v2154
        %v2257 = vmul.f32 %v2241, %v2159
        %v2258 = vmul.f32 %v2242, %v2164
        %v2259 = vmul.f32 %v2243, %v2169
        %v2260 = vmul.f32 %v2244, %v2174
        %v2261 = vmul.f32 %v2245, %v2179
        %v2262 = vadd.f32 %v2246, %v2247
        %v2263 = vadd.f32 %v2262, %v2248
        %v2264 = vadd.f32 %v2263, %v2249
        %v2265 = vadd.f32 %v2264, %v2250
        %v2266 = vadd.f32 %v2265, %v2251
        %v2267 = vadd.f32 %v2266, %v2252
        %v2268 = vadd.f32 %v2267, %v2253
        %v2269 = vadd.f32 %v2268, %v2254
        %v2270 = vadd.f32 %v2269, %v2255
        %v2271 = vadd.f32 %v2270, %v2256
        %v2272 = vadd.f32 %v2271, %v2257
        %v2273 = vadd.f32 %v2272, %v2258
        %v2274 = vadd.f32 %v2273, %v2259
        %v2275 = vadd.f32 %v2274, %v2260
        %v2276 = vadd.f32 %v2275, %v2261
        %v2277 = vrot.slane %v2276, 4
        %v2278 = vadd.f32 %v2276, %v2277
        %v2279 = vrot.slane %v2278, 2
        %v2280 = vadd.f32 %v2278, %v2279
        %v2281 = vrot.slane %v2280, 1
        %v2282 = vadd.f32 %v2280, %v2281
        %v2283 = vadd.f32 %v2282, %v2223
        %2284 = vst.msk [vmem:[%s274 + $0x1] sm:$0x1] %vm2228, %v2283
        %v2285 = vld [vmem:[#allocation2 + $0x10] sm:$0xff]
        %v2286 = vld [vmem:[#allocation2 + $0x30] sm:$0xff]
        %v2287 = vld [vmem:[#allocation2 + $0x50] sm:$0xff]
        %v2288 = vld [vmem:[#allocation2 + $0x70] sm:$0xff]
        %v2289 = vld [vmem:[#allocation2 + $0x90] sm:$0xff]
        %v2290 = vld [vmem:[#allocation2 + $0xb0] sm:$0xff]
        %v2291 = vld [vmem:[#allocation2 + $0xd0] sm:$0xff]
        %v2292 = vld [vmem:[#allocation2 + $0xf0] sm:$0xff]
        %v2293 = vld [vmem:[#allocation2 + $0x110] sm:$0xff]
        %v2294 = vld [vmem:[#allocation2 + $0x130] sm:$0xff]
        %v2295 = vld [vmem:[#allocation2 + $0x150] sm:$0xff]
        %v2296 = vld [vmem:[#allocation2 + $0x170] sm:$0xff]
        %v2297 = vld [vmem:[#allocation2 + $0x190] sm:$0xff]
        %v2298 = vld [vmem:[#allocation2 + $0x1b0] sm:$0xff]
        %v2299 = vld [vmem:[#allocation2 + $0x1d0] sm:$0xff]
        %v2300 = vld [vmem:[#allocation2 + $0x1f0] sm:$0xff]
        %v2301 = vmul.f32 %v2285, %v2104
        %v2302 = vmul.f32 %v2286, %v2109
        %v2303 = vmul.f32 %v2287, %v2114
        %v2304 = vmul.f32 %v2288, %v2119
        %v2305 = vmul.f32 %v2289, %v2124
        %v2306 = vmul.f32 %v2290, %v2129
        %v2307 = vmul.f32 %v2291, %v2134
        %v2308 = vmul.f32 %v2292, %v2139
        %v2309 = vmul.f32 %v2293, %v2144
        %v2310 = vmul.f32 %v2294, %v2149
        %v2311 = vmul.f32 %v2295, %v2154
        %v2312 = vmul.f32 %v2296, %v2159
        %v2313 = vmul.f32 %v2297, %v2164
        %v2314 = vmul.f32 %v2298, %v2169
        %v2315 = vmul.f32 %v2299, %v2174
        %v2316 = vmul.f32 %v2300, %v2179
        %v2317 = vadd.f32 %v2301, %v2302
        %v2318 = vadd.f32 %v2317, %v2303
        %v2319 = vadd.f32 %v2318, %v2304
        %v2320 = vadd.f32 %v2319, %v2305
        %v2321 = vadd.f32 %v2320, %v2306
        %v2322 = vadd.f32 %v2321, %v2307
        %v2323 = vadd.f32 %v2322, %v2308
        %v2324 = vadd.f32 %v2323, %v2309
        %v2325 = vadd.f32 %v2324, %v2310
        %v2326 = vadd.f32 %v2325, %v2311
        %v2327 = vadd.f32 %v2326, %v2312
        %v2328 = vadd.f32 %v2327, %v2313
        %v2329 = vadd.f32 %v2328, %v2314
        %v2330 = vadd.f32 %v2329, %v2315
        %v2331 = vadd.f32 %v2330, %v2316
        %v2332 = vrot.slane %v2331, 4
        %v2333 = vadd.f32 %v2331, %v2332
        %v2334 = vrot.slane %v2333, 2
        %v2335 = vadd.f32 %v2333, %v2334
        %v2336 = vrot.slane %v2335, 1
        %v2337 = vadd.f32 %v2335, %v2336
        %v2338 = vadd.f32 %v2337, %v2223
        %2339 = vst.msk [vmem:[%s274 + $0x2] sm:$0x1] %vm2228, %v2338
        %v2340 = vld [vmem:[#allocation2 + $0x18] sm:$0xff]
        %v2341 = vld [vmem:[#allocation2 + $0x38] sm:$0xff]
        %v2342 = vld [vmem:[#allocation2 + $0x58] sm:$0xff]
        %v2343 = vld [vmem:[#allocation2 + $0x78] sm:$0xff]
        %v2344 = vld [vmem:[#allocation2 + $0x98] sm:$0xff]
        %v2345 = vld [vmem:[#allocation2 + $0xb8] sm:$0xff]
        %v2346 = vld [vmem:[#allocation2 + $0xd8] sm:$0xff]
        %v2347 = vld [vmem:[#allocation2 + $0xf8] sm:$0xff]
        %v2348 = vld [vmem:[#allocation2 + $0x118] sm:$0xff]
        %v2349 = vld [vmem:[#allocation2 + $0x138] sm:$0xff]
        %v2350 = vld [vmem:[#allocation2 + $0x158] sm:$0xff]
        %v2351 = vld [vmem:[#allocation2 + $0x178] sm:$0xff]
        %v2352 = vld [vmem:[#allocation2 + $0x198] sm:$0xff]
        %v2353 = vld [vmem:[#allocation2 + $0x1b8] sm:$0xff]
        %v2354 = vld [vmem:[#allocation2 + $0x1d8] sm:$0xff]
        %v2355 = vld [vmem:[#allocation2 + $0x1f8] sm:$0xff]
        %v2356 = vmul.f32 %v2340, %v2104
        %v2357 = vmul.f32 %v2341, %v2109
        %v2358 = vmul.f32 %v2342, %v2114
        %v2359 = vmul.f32 %v2343, %v2119
        %v2360 = vmul.f32 %v2344, %v2124
        %v2361 = vmul.f32 %v2345, %v2129
        %v2362 = vmul.f32 %v2346, %v2134
        %v2363 = vmul.f32 %v2347, %v2139
        %v2364 = vmul.f32 %v2348, %v2144
        %v2365 = vmul.f32 %v2349, %v2149
        %v2366 = vmul.f32 %v2350, %v2154
        %v2367 = vmul.f32 %v2351, %v2159
        %v2368 = vmul.f32 %v2352, %v2164
        %v2369 = vmul.f32 %v2353, %v2169
        %v2370 = vmul.f32 %v2354, %v2174
        %v2371 = vmul.f32 %v2355, %v2179
        %v2372 = vadd.f32 %v2356, %v2357
        %v2373 = vadd.f32 %v2372, %v2358
        %v2374 = vadd.f32 %v2373, %v2359
        %v2375 = vadd.f32 %v2374, %v2360
        %v2376 = vadd.f32 %v2375, %v2361
        %v2377 = vadd.f32 %v2376, %v2362
        %v2378 = vadd.f32 %v2377, %v2363
        %v2379 = vadd.f32 %v2378, %v2364
        %v2380 = vadd.f32 %v2379, %v2365
        %v2381 = vadd.f32 %v2380, %v2366
        %v2382 = vadd.f32 %v2381, %v2367
        %v2383 = vadd.f32 %v2382, %v2368
        %v2384 = vadd.f32 %v2383, %v2369
        %v2385 = vadd.f32 %v2384, %v2370
        %v2386 = vadd.f32 %v2385, %v2371
        %v2387 = vrot.slane %v2386, 4
        %v2388 = vadd.f32 %v2386, %v2387
        %v2389 = vrot.slane %v2388, 2
        %v2390 = vadd.f32 %v2388, %v2389
        %v2391 = vrot.slane %v2390, 1
        %v2392 = vadd.f32 %v2390, %v2391
        %v2393 = vadd.f32 %v2392, %v2223
        %2394 = vst.msk [vmem:[%s274 + $0x3] sm:$0x1] %vm2228, %v2393
        %s2395 = sand.u32 %s183, 1
        %s2396 = scalar_lea.sflag [#allocation6], %s2395
        %s2397 = sand.u32 %s183, 1
        %s2398 = smul.addr %s2397, 4
        %s2399 = scalar_lea.vmem [#allocation5], %s2398
        // Predicated region
        $region49: #{tpu_custom_call.1} parent=47 // pred_check
          %p2400 = pneg %p193
        $region50: #{tpu_custom_call.1} parent=47 // pred_check_branch
          %2402 = sbr.rel (%p2400) target = $region52
        $region51: #{tpu_custom_call.1} parent=47 // pred_region
          %s2403 = smul.u32 4, %s23
          %2405 = vsyncadd %s2396, 0
          %s2406 = scalar_lea.hbm %s7, %s2403
          %s2408 = sshll.u32 %s2399, 4
          %s2409 = int_to_ptr.vmem [resolvable:$true] %s2408
          %s2410 = sshll.u32 %s2406, 4
          %s2411 = int_to_ptr.hbm [resolvable:$true] %s2410
          %2413 = dma.vmem_to_hbm [thread:$0]  %s2409, 64, %s2411, %s2396
        $region52: #{tpu_custom_call.1} parent=47 // pred_fallthru
          _
      $region48: #{tpu_custom_call.1} parent=5 // pred_fallthru
        _
      %p2414 = scmp.le.s32.totalorder 2, %s18
      // Predicated region
      $region53: #{tpu_custom_call.1} parent=5 // pred_check
        %p2415 = pneg %p2414
      $region54: #{tpu_custom_call.1} parent=5 // pred_check_branch
        %2417 = sbr.rel (%p2415) target = $region56
      $region55: #{tpu_custom_call.1} parent=5 // pred_region
        %s2418 = ssub.s32 %s18, 2
        // Predicated region
        $region57: #{tpu_custom_call.1} parent=55 // pred_check
          %p2419 = pneg %p199
        $region58: #{tpu_custom_call.1} parent=55 // pred_check_branch
          %2421 = sbr.rel (%p2419) target = $region60
        $region59: #{tpu_custom_call.1} parent=55 // pred_region
          %s2422 = sand.u32 %s184, 1
          %s2423 = scalar_lea.sflag [#allocation6], %s2422
          %s2424 = sand.u32 %s184, 1
          %s2425 = smul.addr %s2424, 4
          %s2426 = scalar_lea.vmem [#allocation5], %s2425
          %2428 = dma.done %s2423, 64
        $region60: #{tpu_custom_call.1} parent=55 // pred_fallthru
          _
      $region56: #{tpu_custom_call.1} parent=5 // pred_fallthru
        _
    $region6: #{tpu_custom_call.1} parent=1 // loop_footer
      %s22 = sadd.s32 1, %s18
    $region7: #{tpu_custom_call.1} parent=1 // loop_footer_branch
      %17 = sbr.rel target = $region3
    $region8: #{tpu_custom_call.1} parent=1 // loop_exit
      _
    %2429 = vsyncpa [#allocation6], 1
    %s2430 = scalar_lea.sflag [#allocation6], 1
    %2431 = vsyncpa %s2430, 1

</llo_original>
